<compile_context>
chip_gen: v6e
topology: v6e:2x2x1
jax: 0.10.0
libtpu: 0.0.40
codegen_flags: <defaults>
</compile_context>

<pallas_src>
import math

import jax
import jax.numpy as jnp
from jax.experimental import pallas as pl
from jax.experimental.pallas import tpu as pltpu

_NEG_INF = -1e30
_LANE = 128


def _make_kernel(*, nhead, eps, lk_real, has_qpos, has_pos, need_weights,
                 compute_dtype):
    """One grid step = `Bt` batch elements.  Refs arrive in wrapper order."""
    fuse_kv = not has_pos   # k-input == v-input  ->  single (D, 2D) projection

    def kernel(*refs):
        it = iter(refs)
        tgt_ref = next(it)
        qpos_ref = next(it) if has_qpos else None
        mem_ref = next(it)
        pos_ref = next(it) if has_pos else None
        wq_ref = next(it)
        if fuse_kv:
            wkv_ref = next(it)
        else:
            wk_ref, wv_ref = next(it), next(it)
        bq_ref = next(it)
        if fuse_kv:
            bkv_ref = next(it)
        else:
            bk_ref, bv_ref = next(it), next(it)
        wo_ref, bo_ref, g_ref, beta_ref = next(it), next(it), next(it), next(it)
        out_ref = next(it)
        attn_ref = next(it) if need_weights else None
        ctx_scr = next(it)                       # (Bt*Lq, D) compute_dtype VMEM

        f32 = jnp.float32
        Bt, Lq, D = tgt_ref.shape
        Lk = mem_ref.shape[1]                    # padded key length
        dh = D // nhead

        # ---- Q/K/V inputs (f32 copy of tgt is reused by the residual) ----
        tgt = tgt_ref[...].astype(f32)
        q_in = tgt + qpos_ref[...].astype(f32) if has_qpos else tgt
        q2 = q_in.reshape(Bt * Lq, D).astype(compute_dtype)

        mem = mem_ref[...]
        if has_pos:
            k2 = (mem.astype(f32) + pos_ref[...].astype(f32)
                  ).reshape(Bt * Lk, D).astype(compute_dtype)
        v2 = mem.astype(compute_dtype).reshape(Bt * Lk, D)

        # ---- projections: MXU matmuls, f32 accumulation, ONE cast to bf16 ----
        # (1/sqrt(dh) is folded into wq / bq in the wrapper.)
        q = (jnp.dot(q2, wq_ref[...], preferred_element_type=f32)
             + bq_ref[...]).astype(compute_dtype)
        if fuse_kv:
            kv = (jnp.dot(v2, wkv_ref[...], preferred_element_type=f32)
                  + bkv_ref[...]).astype(compute_dtype)
            k, v = kv[:, :D], kv[:, D:]
        else:
            k = (jnp.dot(k2, wk_ref[...], preferred_element_type=f32)
                 + bk_ref[...]).astype(compute_dtype)
            v = (jnp.dot(v2, wv_ref[...], preferred_element_type=f32)
                 + bv_ref[...]).astype(compute_dtype)

        q3 = q.reshape(Bt, Lq, D)
        k3 = k.reshape(Bt, Lk, D)
        v3 = v.reshape(Bt, Lk, D)

        # key-padding bias for the lane-padded Lk (hoisted out of the head loop)
        if Lk != lk_real:
            col = jax.lax.broadcasted_iota(jnp.int32, (1, Lk), 1)
            pad_bias = jnp.where(col < lk_real, 0.0, _NEG_INF
                                 ).astype(f32).reshape(1, 1, Lk)
        else:
            pad_bias = None

        # ---- per-head attention (softmax in f32) -------------------------
        # TODO(synk): the dh-lane head slices still relayout; a head-batched
        #             "(b h) q d" layout would amortize them further.
        for h in range(nhead):
            lo, hi = h * dh, (h + 1) * dh
            qh, kh, vh = q3[:, :, lo:hi], k3[:, :, lo:hi], v3[:, :, lo:hi]
            s = jnp.einsum('bqd,bkd->bqk', qh, kh,
                           preferred_element_type=f32)       # (Bt, Lq, Lk)
            if pad_bias is not None:
                s = s + pad_bias
            s = s - jnp.max(s, axis=-1, keepdims=True)
            p = jnp.exp(s)
            denom = jnp.sum(p, axis=-1, keepdims=True)
            # exact reciprocal when the weights are returned downstream,
            # EUP-approx (free slot) otherwise.
            p = p * pl.reciprocal(denom, approx=not need_weights)
            ctx = jnp.einsum('bqk,bkd->bqd', p.astype(compute_dtype), vh,
                             preferred_element_type=f32)     # (Bt, Lq, dh)
            ctx_scr[:, lo:hi] = ctx.reshape(Bt * Lq, dh).astype(compute_dtype)
            if need_weights:
                if h == 0:
                    attn_ref[...] = p
                else:
                    attn_ref[...] += p
        if need_weights:   # PyTorch default average_attn_weights=True
            attn_ref[...] = attn_ref[...] * (1.0 / nhead)

        # ---- single K=D output projection + residual + LayerNorm ---------
        attn_out = jnp.dot(ctx_scr[...], wo_ref[...],
                           preferred_element_type=f32) + bo_ref[...]
        x = tgt.reshape(Bt * Lq, D) + attn_out
        mean = jnp.mean(x, axis=-1, keepdims=True)
        xc = x - mean
        var = jnp.mean(xc * xc, axis=-1, keepdims=True)
        y = xc * jax.lax.rsqrt(var + eps)
        y = y * g_ref[...] + beta_ref[...]
        out_ref[...] = y.reshape(Bt, Lq, D).astype(out_ref.dtype)

    return kernel


def _vmem_plan():
    """Per-generation tiling budget / grid / scoped-VMEM limit."""
    kind = ""
    try:
        kind = jax.devices()[0].device_kind.lower()
    except Exception:
        pass
    if "v7" in kind:   # 2 TensorCores, 64 MiB VMEM each
        return {"budget": 24 << 20, "min_grid": 2, "vmem_limit": 48 << 20}
    if "v6" in kind:   # 1 TC, 128 MiB VMEM
        return {"budget": 40 << 20, "min_grid": 1, "vmem_limit": 96 << 20}
    if "v5" in kind:   # 1 TC, 128 MiB VMEM, lowest HBM BW
        return {"budget": 16 << 20, "min_grid": 1, "vmem_limit": 64 << 20}
    return {"budget": 16 << 20, "min_grid": 1, "vmem_limit": 48 << 20}


def _pick_batch_block(B, Lq, Lk, D, *, act_itemsize, w_itemsize, need_weights,
                      has_qpos, has_pos, budget_bytes, min_grid):
    """Largest batch block that divides B, keeps grid >= min_grid, and whose
    estimated VMEM footprint (double-buffered DMA blocks + live intermediates)
    fits the per-generation budget."""
    n_q = 2 if has_qpos else 1
    n_k = 2 if has_pos else 1
    # weights + biases (pipeline double-buffers them even though their block
    # index never changes).
    fixed = 2 * w_itemsize * 4 * D * D + 2 * 4 * 8 * D
    budget = max(budget_bytes - fixed, budget_bytes // 4)
    per_b = (
        2 * act_itemsize * D * (n_q * Lq + n_k * Lk)     # activation blocks (x2 buf)
        + 2 * 4 * Lq * D                                 # out block (x2 buf)
        + (2 * 4 * Lq * Lk if need_weights else 0)       # attn block (x2 buf)
        + 6 * D * (Lq + 2 * Lk)                          # q/k/v f32 + bf16 copies
        + 4 * D * Lq                                     # f32 tgt / residual
        + 3 * 4 * Lq * Lk                                # scores / p live
        + 2 * Lq * D                                     # ctx scratch (bf16)
    )
    cands = [bt for bt in range(1, B + 1)
             if B % bt == 0 and B // bt >= min_grid and bt * per_b <= budget]
    if not cands:
        # TODO(synk): for very long memory sequences even Bt=1 can overflow
        # VMEM; an Lk grid axis with online-softmax (flash-style) accumulation
        # would bound the footprint.
        return 1
    return max(cands)


def cross_attention_layer(tgt, memory, params, *, nhead,
                          memory_mask=None, memory_key_padding_mask=None,
                          pos=None, query_pos=None, eps=1e-5, use_bf16=True,
                          need_weights=True, batch_block=None):
    """tgt: (Lq, B, D), memory: (Lk, B, D)  -- PyTorch seq-first layout.
    Returns (tgt_out (Lq, B, D) f32, attn_weights (B, Lq, Lk) f32 or None)."""
    if memory_mask is not None or memory_key_padding_mask is not None:
        # TODO(synk): attn_mask / key_padding_mask not implemented (reference passes None).
        raise NotImplementedError("memory_mask / memory_key_padding_mask not supported")

    Lq, B, D = tgt.shape
    Lk = memory.shape[0]
    assert D % nhead == 0, "d_model must be divisible by nhead"
    dh = D // nhead
    scale = 1.0 / math.sqrt(dh)

    has_qpos = query_pos is not None
    has_pos = pos is not None
    fuse_kv = not has_pos

    w_dtype = jnp.bfloat16 if use_bf16 else jnp.float32
    act_dtype = w_dtype

    # seq-first -> batch-first; activations shipped in bf16 (halves DMA).
    tgt_b = jnp.transpose(tgt, (1, 0, 2)).astype(act_dtype)
    mem_b = jnp.transpose(memory, (1, 0, 2)).astype(act_dtype)
    qpos_b = jnp.transpose(query_pos, (1, 0, 2)).astype(act_dtype) if has_qpos else None
    pos_b = jnp.transpose(pos, (1, 0, 2)).astype(act_dtype) if has_pos else None

    # pad the key sequence so score / attn lane dims are 128-dense.
    pad = (-Lk) % _LANE
    Lk_pad = Lk + pad
    if pad:
        mem_b = jnp.pad(mem_b, ((0, 0), (0, pad), (0, 0)))
        if has_pos:
            pos_b = jnp.pad(pos_b, ((0, 0), (0, pad), (0, 0)))

    # weights pre-transposed to (D_in, D_out), bf16; 1/sqrt(dh) folded into Q.
    wqT = (params["wq"].T * scale).astype(w_dtype)
    bq = (params["bq"] * scale).astype(jnp.float32)
    woT = params["wo"].T.astype(w_dtype)
    bo = params["bo"].astype(jnp.float32)
    gamma = params["ln_w"].astype(jnp.float32)
    beta = params["ln_b"].astype(jnp.float32)
    if fuse_kv:
        wkvT = jnp.concatenate([params["wk"].T, params["wv"].T], axis=1).astype(w_dtype)
        bkv = jnp.concatenate([params["bk"], params["bv"]], axis=1).astype(jnp.float32)
    else:
        wkT = params["wk"].T.astype(w_dtype)
        wvT = params["wv"].T.astype(w_dtype)
        bk = params["bk"].astype(jnp.float32)
        bv = params["bv"].astype(jnp.float32)

    plan = _vmem_plan()
    if batch_block is None:
        batch_block = _pick_batch_block(
            B, Lq, Lk_pad, D,
            act_itemsize=jnp.dtype(act_dtype).itemsize,
            w_itemsize=jnp.dtype(w_dtype).itemsize,
            need_weights=need_weights, has_qpos=has_qpos, has_pos=has_pos,
            budget_bytes=plan["budget"], min_grid=plan["min_grid"])
    assert B % batch_block == 0
    Bt = batch_block

    q_spec = pl.BlockSpec((Bt, Lq, D), lambda b: (b, 0, 0))
    k_spec = pl.BlockSpec((Bt, Lk_pad, D), lambda b: (b, 0, 0))
    # TODO(synk): weights could be single-buffered (pipeline_mode=pl.Buffered(1))
    #             since their block index never changes; kept default for safety.
    mat_spec = pl.BlockSpec((D, D), lambda b: (0, 0))
    kv_mat_spec = pl.BlockSpec((D, 2 * D), lambda b: (0, 0))
    vec_spec = pl.BlockSpec((1, D), lambda b: (0, 0))
    vec2_spec = pl.BlockSpec((1, 2 * D), lambda b: (0, 0))

    inputs, in_specs = [tgt_b], [q_spec]
    if has_qpos:
        inputs.append(qpos_b)
        in_specs.append(q_spec)
    inputs.append(mem_b)
    in_specs.append(k_spec)
    if has_pos:
        inputs.append(pos_b)
        in_specs.append(k_spec)
    if fuse_kv:
        inputs += [wqT, wkvT, bq, bkv, woT, bo, gamma, beta]
        in_specs += [mat_spec, kv_mat_spec, vec_spec, vec2_spec,
                     mat_spec, vec_spec, vec_spec, vec_spec]
    else:
        inputs += [wqT, wkT, wvT, bq, bk, bv, woT, bo, gamma, beta]
        in_specs += [mat_spec, mat_spec, mat_spec, vec_spec, vec_spec, vec_spec,
                     mat_spec, vec_spec, vec_spec, vec_spec]

    if need_weights:
        out_shape = (jax.ShapeDtypeStruct((B, Lq, D), jnp.float32),
                     jax.ShapeDtypeStruct((B, Lq, Lk_pad), jnp.float32))
        out_specs = [pl.BlockSpec((Bt, Lq, D), lambda b: (b, 0, 0)),
                     pl.BlockSpec((Bt, Lq, Lk_pad), lambda b: (b, 0, 0))]
    else:
        out_shape = jax.ShapeDtypeStruct((B, Lq, D), jnp.float32)
        out_specs = pl.BlockSpec((Bt, Lq, D), lambda b: (b, 0, 0))

    kernel = _make_kernel(nhead=nhead, eps=eps, lk_real=Lk, has_qpos=has_qpos,
                          has_pos=has_pos, need_weights=need_weights,
                          compute_dtype=w_dtype)

    # Advisory cost estimate (projections + attention; exp / recip / rsqrt).
    flops = 2 * B * (2 * (Lq + Lk_pad) * D * D + 2 * Lq * Lk_pad * D)
    transcendentals = B * nhead * Lq * (Lk_pad + 1) + B * Lq
    out_bytes = 4 * B * Lq * D + (4 * B * Lq * Lk_pad if need_weights else 0)
    bytes_accessed = sum(int(a.size) * a.dtype.itemsize for a in inputs) + out_bytes

    results = pl.pallas_call(
        kernel,
        out_shape=out_shape,
        grid_spec=pltpu.PrefetchScalarGridSpec(
            num_scalar_prefetch=0,
            grid=(B // Bt,),
            in_specs=in_specs,
            out_specs=out_specs,
            scratch_shapes=[pltpu.VMEM((Bt * Lq, D), w_dtype)],
        ),
        compiler_params=pltpu.CompilerParams(
            dimension_semantics=("parallel",),
            vmem_limit_bytes=plan["vmem_limit"]),
        cost_estimate=pl.CostEstimate(flops=int(flops),
                                      transcendentals=int(transcendentals),
                                      bytes_accessed=int(bytes_accessed)),
    )(*inputs)

    if need_weights:
        out, attn = results
        if pad:
            attn = attn[:, :, :Lk]
    else:
        out = results
        attn = None

    # batch-first -> seq-first, matching the PyTorch module's output convention.
    return jnp.transpose(out, (1, 0, 2)), attn


# ---------------------------------------------------------------------------
# Parameter init (xavier weights, small random biases for test coverage) and a
# pure-JAX f32 reference for a loose numerical sanity check.
# ---------------------------------------------------------------------------
def _xavier_uniform(key, shape):
    fan_out, fan_in = shape
    bound = math.sqrt(6.0 / (fan_in + fan_out))
    return jax.random.uniform(key, shape, jnp.float32, -bound, bound)


def init_params(key, d_model):
    keys = jax.random.split(key, 8)
    in_proj_w = _xavier_uniform(keys[0], (3 * d_model, d_model))
    out_proj_w = _xavier_uniform(keys[1], (d_model, d_model))

    def vec(k, s=0.1):
        return s * jax.random.normal(k, (1, d_model), jnp.float32)

    return {
        "wq": in_proj_w[0 * d_model:1 * d_model],
        "wk": in_proj_w[1 * d_model:2 * d_model],
        "wv": in_proj_w[2 * d_model:3 * d_model],
        "bq": vec(keys[2]), "bk": vec(keys[3]), "bv": vec(keys[4]),
        "wo": out_proj_w,
        "bo": vec(keys[5]),
        "ln_w": 1.0 + vec(keys[6]),
        "ln_b": vec(keys[7]),
    }


def _reference(tgt, memory, params, nhead, query_pos, pos, eps=1e-5):
    Lq, B, D = tgt.shape
    Lk = memory.shape[0]
    dh = D // nhead
    q_in = tgt + query_pos if query_pos is not None else tgt
    k_in = memory + pos if pos is not None else memory

    def proj(x, w, b):  # w is PyTorch (D_out, D_in)
        return jnp.einsum('lbd,ed->lbe', x, w) + b

    q = proj(q_in, params["wq"], params["bq"]) / math.sqrt(dh)
    k = proj(k_in, params["wk"], params["bk"])
    v = proj(memory, params["wv"], params["bv"])

    def split(x, L):  # (L, B, D) -> (B, h, L, dh)
        return jnp.transpose(x.reshape(L, B, nhead, dh), (1, 2, 0, 3))

    qh, kh, vh = split(q, Lq), split(k, Lk), split(v, Lk)
    s = jnp.einsum('bhqd,bhkd->bhqk', qh, kh)
    p = jax.nn.softmax(s, axis=-1)
    ctx = jnp.einsum('bhqk,bhkd->bhqd', p, vh)
    ctx = jnp.transpose(ctx, (2, 0, 1, 3)).reshape(Lq, B, D)
    attn_out = jnp.einsum('lbd,ed->lbe', ctx, params["wo"]) + params["bo"]
    x = tgt + attn_out
    mean = jnp.mean(x, axis=-1, keepdims=True)
    var = jnp.mean((x - mean) ** 2, axis=-1, keepdims=True)
    y = (x - mean) * jax.lax.rsqrt(var + eps) * params["ln_w"] + params["ln_b"]
    return y, jnp.mean(p, axis=1)


if __name__ == "__main__":
    d_model, nhead = 32, 4
    Lq, Lk, B = 8, 16, 2

    key = jax.random.PRNGKey(0)
    k_p, k_t, k_m, k_qp, k_pp = jax.random.split(key, 5)

    params = init_params(k_p, d_model)
    tgt = jax.random.normal(k_t, (Lq, B, d_model), jnp.float32)
    memory = jax.random.normal(k_m, (Lk, B, d_model), jnp.float32)
    query_pos = jax.random.normal(k_qp, (Lq, B, d_model), jnp.float32)
    pos = jax.random.normal(k_pp, (Lk, B, d_model), jnp.float32)

    # 1) full path: positional embeddings + attention-weights output.
    out, attn = cross_attention_layer(tgt, memory, params, nhead=nhead,
                                      query_pos=query_pos, pos=pos)
    jax.block_until_ready((out, attn))
    assert out.shape == (Lq, B, d_model)
    assert attn.shape == (B, Lq, Lk)
    # exact reciprocal on the returned-weights path -> rows sum to 1.
    assert bool(jnp.allclose(jnp.sum(attn, axis=-1), 1.0, atol=1e-3))

    ref_out, ref_attn = _reference(tgt, memory, params, nhead, query_pos, pos)
    assert float(jnp.max(jnp.abs(out - ref_out))) < 0.1
    assert float(jnp.max(jnp.abs(attn - ref_attn))) < 0.05

    # 2) fused-KV path (pos / query_pos None) with attention output dropped.
    out2, attn2 = cross_attention_layer(tgt, memory, params, nhead=nhead,
                                        need_weights=False)
    jax.block_until_ready(out2)
    assert attn2 is None and out2.shape == (Lq, B, d_model)
    ref_out2, _ = _reference(tgt, memory, params, nhead, None, None)
    assert float(jnp.max(jnp.abs(out2 - ref_out2))) < 0.1

    print("KERNEL_OK")
</pallas_src>

<mosaic_0001>
module attributes {stable_mosaic.version = 11 : i64} {
  func.func @kernel(%arg0: i32, %arg1: memref<2x8x32xbf16, #tpu.memory_space<vmem>>, %arg2: memref<2x8x32xbf16, #tpu.memory_space<vmem>>, %arg3: memref<2x128x32xbf16, #tpu.memory_space<vmem>>, %arg4: memref<2x128x32xbf16, #tpu.memory_space<vmem>>, %arg5: memref<32x32xbf16, #tpu.memory_space<vmem>>, %arg6: memref<32x32xbf16, #tpu.memory_space<vmem>>, %arg7: memref<32x32xbf16, #tpu.memory_space<vmem>>, %arg8: memref<1x32xf32, #tpu.memory_space<vmem>>, %arg9: memref<1x32xf32, #tpu.memory_space<vmem>>, %arg10: memref<1x32xf32, #tpu.memory_space<vmem>>, %arg11: memref<32x32xbf16, #tpu.memory_space<vmem>>, %arg12: memref<1x32xf32, #tpu.memory_space<vmem>>, %arg13: memref<1x32xf32, #tpu.memory_space<vmem>>, %arg14: memref<1x32xf32, #tpu.memory_space<vmem>>, %arg15: memref<2x8x32xf32, #tpu.memory_space<vmem>>, %arg16: memref<2x8x128xf32, #tpu.memory_space<vmem>>, %arg17: memref<16x32xbf16, #tpu.memory_space<vmem>>) attributes {dimension_semantics = [#tpu.dimension_semantics<parallel>], iteration_bounds = array<i64: 1>, scalar_prefetch = 0 : i64, scratch_operands = 1 : i64, tpu.core_type = #tpu.core_type<tc>, window_params = [{transform_indices = @transform_0, window_bounds = array<i64: 2, 8, 32>}, {transform_indices = @transform_1, window_bounds = array<i64: 2, 8, 32>}, {transform_indices = @transform_2, window_bounds = array<i64: 2, 128, 32>}, {transform_indices = @transform_3, window_bounds = array<i64: 2, 128, 32>}, {pipeline_mode = #tpu.pipeline_mode<synchronous>, transform_indices = @transform_4, window_bounds = array<i64: 32, 32>}, {pipeline_mode = #tpu.pipeline_mode<synchronous>, transform_indices = @transform_5, window_bounds = array<i64: 32, 32>}, {pipeline_mode = #tpu.pipeline_mode<synchronous>, transform_indices = @transform_6, window_bounds = array<i64: 32, 32>}, {pipeline_mode = #tpu.pipeline_mode<synchronous>, transform_indices = @transform_7, window_bounds = array<i64: 1, 32>}, {pipeline_mode = #tpu.pipeline_mode<synchronous>, transform_indices = @transform_8, window_bounds = array<i64: 1, 32>}, {pipeline_mode = #tpu.pipeline_mode<synchronous>, transform_indices = @transform_9, window_bounds = array<i64: 1, 32>}, {pipeline_mode = #tpu.pipeline_mode<synchronous>, transform_indices = @transform_10, window_bounds = array<i64: 32, 32>}, {pipeline_mode = #tpu.pipeline_mode<synchronous>, transform_indices = @transform_11, window_bounds = array<i64: 1, 32>}, {pipeline_mode = #tpu.pipeline_mode<synchronous>, transform_indices = @transform_12, window_bounds = array<i64: 1, 32>}, {pipeline_mode = #tpu.pipeline_mode<synchronous>, transform_indices = @transform_13, window_bounds = array<i64: 1, 32>}, {transform_indices = @transform_14, window_bounds = array<i64: 2, 8, 32>}, {transform_indices = @transform_15, window_bounds = array<i64: 2, 8, 128>}]} {
    %c0 = arith.constant 0 : index
    %c0_0 = arith.constant 0 : index
    %c0_1 = arith.constant 0 : index
    %0 = vector.load %arg1[%c0, %c0_0, %c0_1] : memref<2x8x32xbf16, #tpu.memory_space<vmem>>, vector<2x8x32xbf16>
    %1 = arith.extf %0 : vector<2x8x32xbf16> to vector<2x8x32xf32>
    %c0_2 = arith.constant 0 : index
    %c0_3 = arith.constant 0 : index
    %c0_4 = arith.constant 0 : index
    %2 = vector.load %arg2[%c0_2, %c0_3, %c0_4] : memref<2x8x32xbf16, #tpu.memory_space<vmem>>, vector<2x8x32xbf16>
    %3 = arith.extf %2 : vector<2x8x32xbf16> to vector<2x8x32xf32>
    %4 = arith.addf %1, %3 : vector<2x8x32xf32>
    %5 = vector.shape_cast %4 : vector<2x8x32xf32> to vector<16x32xf32>
    %6 = arith.truncf %5 : vector<16x32xf32> to vector<16x32xbf16>
    %c0_5 = arith.constant 0 : index
    %c0_6 = arith.constant 0 : index
    %c0_7 = arith.constant 0 : index
    %7 = vector.load %arg3[%c0_5, %c0_6, %c0_7] : memref<2x128x32xbf16, #tpu.memory_space<vmem>>, vector<2x128x32xbf16>
    %8 = arith.extf %7 : vector<2x128x32xbf16> to vector<2x128x32xf32>
    %c0_8 = arith.constant 0 : index
    %c0_9 = arith.constant 0 : index
    %c0_10 = arith.constant 0 : index
    %9 = vector.load %arg4[%c0_8, %c0_9, %c0_10] : memref<2x128x32xbf16, #tpu.memory_space<vmem>>, vector<2x128x32xbf16>
    %10 = arith.extf %9 : vector<2x128x32xbf16> to vector<2x128x32xf32>
    %11 = arith.addf %8, %10 : vector<2x128x32xf32>
    %12 = vector.shape_cast %11 : vector<2x128x32xf32> to vector<256x32xf32>
    %13 = arith.truncf %12 : vector<256x32xf32> to vector<256x32xbf16>
    %14 = vector.shape_cast %7 : vector<2x128x32xbf16> to vector<256x32xbf16>
    %c0_11 = arith.constant 0 : index
    %c0_12 = arith.constant 0 : index
    %15 = vector.load %arg5[%c0_11, %c0_12] : memref<32x32xbf16, #tpu.memory_space<vmem>>, vector<32x32xbf16>
    %cst = arith.constant dense<0.000000e+00> : vector<16x32xf32>
    %16 = tpu.matmul %6, %15, %cst {dimension_numbers = #tpu.dot_dimension_numbers<[1], [0], [0], [1], [0, 0, 1, 1], [], []>} : vector<16x32xbf16>, vector<32x32xbf16>, vector<16x32xf32> -> vector<16x32xf32>
    %c0_13 = arith.constant 0 : index
    %c0_14 = arith.constant 0 : index
    %17 = vector.load %arg8[%c0_13, %c0_14] : memref<1x32xf32, #tpu.memory_space<vmem>>, vector<1x32xf32>
    %18 = vector.broadcast %17 : vector<1x32xf32> to vector<16x32xf32>
    %19 = arith.addf %16, %18 : vector<16x32xf32>
    %20 = arith.truncf %19 : vector<16x32xf32> to vector<16x32xbf16>
    %c0_15 = arith.constant 0 : index
    %c0_16 = arith.constant 0 : index
    %21 = vector.load %arg6[%c0_15, %c0_16] : memref<32x32xbf16, #tpu.memory_space<vmem>>, vector<32x32xbf16>
    %cst_17 = arith.constant dense<0.000000e+00> : vector<256x32xf32>
    %22 = tpu.matmul %13, %21, %cst_17 {dimension_numbers = #tpu.dot_dimension_numbers<[1], [0], [0], [1], [0, 0, 1, 1], [], []>} : vector<256x32xbf16>, vector<32x32xbf16>, vector<256x32xf32> -> vector<256x32xf32>
    %c0_18 = arith.constant 0 : index
    %c0_19 = arith.constant 0 : index
    %23 = vector.load %arg9[%c0_18, %c0_19] : memref<1x32xf32, #tpu.memory_space<vmem>>, vector<1x32xf32>
    %24 = vector.broadcast %23 : vector<1x32xf32> to vector<256x32xf32>
    %25 = arith.addf %22, %24 : vector<256x32xf32>
    %26 = arith.truncf %25 : vector<256x32xf32> to vector<256x32xbf16>
    %c0_20 = arith.constant 0 : index
    %c0_21 = arith.constant 0 : index
    %27 = vector.load %arg7[%c0_20, %c0_21] : memref<32x32xbf16, #tpu.memory_space<vmem>>, vector<32x32xbf16>
    %cst_22 = arith.constant dense<0.000000e+00> : vector<256x32xf32>
    %28 = tpu.matmul %14, %27, %cst_22 {dimension_numbers = #tpu.dot_dimension_numbers<[1], [0], [0], [1], [0, 0, 1, 1], [], []>} : vector<256x32xbf16>, vector<32x32xbf16>, vector<256x32xf32> -> vector<256x32xf32>
    %c0_23 = arith.constant 0 : index
    %c0_24 = arith.constant 0 : index
    %29 = vector.load %arg10[%c0_23, %c0_24] : memref<1x32xf32, #tpu.memory_space<vmem>>, vector<1x32xf32>
    %30 = vector.broadcast %29 : vector<1x32xf32> to vector<256x32xf32>
    %31 = arith.addf %28, %30 : vector<256x32xf32>
    %32 = arith.truncf %31 : vector<256x32xf32> to vector<256x32xbf16>
    %33 = vector.shape_cast %20 : vector<16x32xbf16> to vector<2x8x32xbf16>
    %34 = vector.shape_cast %26 : vector<256x32xbf16> to vector<2x128x32xbf16>
    %35 = vector.shape_cast %32 : vector<256x32xbf16> to vector<2x128x32xbf16>
    %36 = tpu.iota {dimensions = array<i32: 1>} : vector<1x128xi32>
    %c16_i32 = arith.constant 16 : i32
    %37 = vector.broadcast %c16_i32 : i32 to vector<1x128xi32>
    %38 = arith.cmpi slt, %36, %37 : vector<1x128xi32>
    %cst_25 = arith.constant 0.000000e+00 : f32
    %cst_26 = arith.constant -1.000000e+30 : f32
    %39 = vector.broadcast %cst_25 : f32 to vector<1x128xf32>
    %40 = vector.broadcast %cst_26 : f32 to vector<1x128xf32>
    %41 = arith.select %38, %39, %40 : vector<1x128xi1>, vector<1x128xf32>
    %42 = vector.shape_cast %41 : vector<1x128xf32> to vector<1x1x128xf32>
    %43 = vector.extract_strided_slice %33 {offsets = [0, 0, 0], sizes = [2, 8, 8], strides = [1, 1, 1]} : vector<2x8x32xbf16> to vector<2x8x8xbf16>
    %44 = vector.extract_strided_slice %34 {offsets = [0, 0, 0], sizes = [2, 128, 8], strides = [1, 1, 1]} : vector<2x128x32xbf16> to vector<2x128x8xbf16>
    %45 = vector.extract_strided_slice %35 {offsets = [0, 0, 0], sizes = [2, 128, 8], strides = [1, 1, 1]} : vector<2x128x32xbf16> to vector<2x128x8xbf16>
    "tpu.trace_start"() <{level = 10 : i32, message = "bqd,bkd->bqk"}> : () -> ()
    %cst_27 = arith.constant dense<0.000000e+00> : vector<2x8x128xf32>
    %46 = tpu.matmul %43, %44, %cst_27 {dimension_numbers = #tpu.dot_dimension_numbers<[2], [2], [1], [1], [0, 0, 0, 1, 1, 1], [0], [0]>} : vector<2x8x8xbf16>, vector<2x128x8xbf16>, vector<2x8x128xf32> -> vector<2x8x128xf32>
    "tpu.trace_stop"() : () -> ()
    %47 = vector.broadcast %42 : vector<1x1x128xf32> to vector<2x8x128xf32>
    %48 = arith.addf %46, %47 : vector<2x8x128xf32>
    %cst_28 = arith.constant dense<0xFF800000> : vector<2x8xf32>
    %49 = vector.multi_reduction <maximumf>, %48, %cst_28 [2] : vector<2x8x128xf32> to vector<2x8xf32>
    %50 = vector.shape_cast %49 : vector<2x8xf32> to vector<2x8x1xf32>
    %51 = vector.broadcast %50 : vector<2x8x1xf32> to vector<2x8x128xf32>
    %52 = arith.subf %48, %51 : vector<2x8x128xf32>
    %53 = math.exp %52 : vector<2x8x128xf32>
    %cst_29 = arith.constant dense<0.000000e+00> : vector<2x8xf32>
    %54 = vector.multi_reduction <add>, %53, %cst_29 [2] : vector<2x8x128xf32> to vector<2x8xf32>
    %55 = vector.shape_cast %54 : vector<2x8xf32> to vector<2x8x1xf32>
    %56 = tpu.reciprocal %55 : vector<2x8x1xf32> -> vector<2x8x1xf32>
    %57 = vector.broadcast %56 : vector<2x8x1xf32> to vector<2x8x128xf32>
    %58 = arith.mulf %53, %57 : vector<2x8x128xf32>
    %59 = arith.truncf %58 : vector<2x8x128xf32> to vector<2x8x128xbf16>
    "tpu.trace_start"() <{level = 10 : i32, message = "bqk,bkd->bqd"}> : () -> ()
    %cst_30 = arith.constant dense<0.000000e+00> : vector<2x8x8xf32>
    %60 = tpu.matmul %59, %45, %cst_30 {dimension_numbers = #tpu.dot_dimension_numbers<[2], [1], [1], [2], [0, 0, 0, 1, 1, 2], [0], [0]>} : vector<2x8x128xbf16>, vector<2x128x8xbf16>, vector<2x8x8xf32> -> vector<2x8x8xf32>
    "tpu.trace_stop"() : () -> ()
    %61 = vector.shape_cast %60 : vector<2x8x8xf32> to vector<16x8xf32>
    %62 = arith.truncf %61 : vector<16x8xf32> to vector<16x8xbf16>
    %c0_31 = arith.constant 0 : index
    %c0_32 = arith.constant 0 : index
    %63 = vector.load %arg17[%c0_31, %c0_32] : memref<16x32xbf16, #tpu.memory_space<vmem>>, vector<16x8xbf16>
    tpu.vector_store %arg17[%c0_31, %c0_32], %62 {strides = array<i32>} : memref<16x32xbf16, #tpu.memory_space<vmem>>, vector<16x8xbf16>,
    %c0_33 = arith.constant 0 : index
    %c0_34 = arith.constant 0 : index
    %c0_35 = arith.constant 0 : index
    %64 = vector.load %arg16[%c0_33, %c0_34, %c0_35] : memref<2x8x128xf32, #tpu.memory_space<vmem>>, vector<2x8x128xf32>
    tpu.vector_store %arg16[%c0_33, %c0_34, %c0_35], %58 {strides = array<i32>} : memref<2x8x128xf32, #tpu.memory_space<vmem>>, vector<2x8x128xf32>,
    %65 = vector.extract_strided_slice %33 {offsets = [0, 0, 8], sizes = [2, 8, 8], strides = [1, 1, 1]} : vector<2x8x32xbf16> to vector<2x8x8xbf16>
    %66 = vector.extract_strided_slice %34 {offsets = [0, 0, 8], sizes = [2, 128, 8], strides = [1, 1, 1]} : vector<2x128x32xbf16> to vector<2x128x8xbf16>
    %67 = vector.extract_strided_slice %35 {offsets = [0, 0, 8], sizes = [2, 128, 8], strides = [1, 1, 1]} : vector<2x128x32xbf16> to vector<2x128x8xbf16>
    "tpu.trace_start"() <{level = 10 : i32, message = "bqd,bkd->bqk"}> : () -> ()
    %cst_36 = arith.constant dense<0.000000e+00> : vector<2x8x128xf32>
    %68 = tpu.matmul %65, %66, %cst_36 {dimension_numbers = #tpu.dot_dimension_numbers<[2], [2], [1], [1], [0, 0, 0, 1, 1, 1], [0], [0]>} : vector<2x8x8xbf16>, vector<2x128x8xbf16>, vector<2x8x128xf32> -> vector<2x8x128xf32>
    "tpu.trace_stop"() : () -> ()
    %69 = vector.broadcast %42 : vector<1x1x128xf32> to vector<2x8x128xf32>
    %70 = arith.addf %68, %69 : vector<2x8x128xf32>
    %cst_37 = arith.constant dense<0xFF800000> : vector<2x8xf32>
    %71 = vector.multi_reduction <maximumf>, %70, %cst_37 [2] : vector<2x8x128xf32> to vector<2x8xf32>
    %72 = vector.shape_cast %71 : vector<2x8xf32> to vector<2x8x1xf32>
    %73 = vector.broadcast %72 : vector<2x8x1xf32> to vector<2x8x128xf32>
    %74 = arith.subf %70, %73 : vector<2x8x128xf32>
    %75 = math.exp %74 : vector<2x8x128xf32>
    %cst_38 = arith.constant dense<0.000000e+00> : vector<2x8xf32>
    %76 = vector.multi_reduction <add>, %75, %cst_38 [2] : vector<2x8x128xf32> to vector<2x8xf32>
    %77 = vector.shape_cast %76 : vector<2x8xf32> to vector<2x8x1xf32>
    %78 = tpu.reciprocal %77 : vector<2x8x1xf32> -> vector<2x8x1xf32>
    %79 = vector.broadcast %78 : vector<2x8x1xf32> to vector<2x8x128xf32>
    %80 = arith.mulf %75, %79 : vector<2x8x128xf32>
    %81 = arith.truncf %80 : vector<2x8x128xf32> to vector<2x8x128xbf16>
    "tpu.trace_start"() <{level = 10 : i32, message = "bqk,bkd->bqd"}> : () -> ()
    %cst_39 = arith.constant dense<0.000000e+00> : vector<2x8x8xf32>
    %82 = tpu.matmul %81, %67, %cst_39 {dimension_numbers = #tpu.dot_dimension_numbers<[2], [1], [1], [2], [0, 0, 0, 1, 1, 2], [0], [0]>} : vector<2x8x128xbf16>, vector<2x128x8xbf16>, vector<2x8x8xf32> -> vector<2x8x8xf32>
    "tpu.trace_stop"() : () -> ()
    %83 = vector.shape_cast %82 : vector<2x8x8xf32> to vector<16x8xf32>
    %84 = arith.truncf %83 : vector<16x8xf32> to vector<16x8xbf16>
    %c0_40 = arith.constant 0 : index
    %c8 = arith.constant 8 : index
    %85 = vector.load %arg17[%c0_40, %c8] : memref<16x32xbf16, #tpu.memory_space<vmem>>, vector<16x8xbf16>
    tpu.vector_store %arg17[%c0_40, %c8], %84 {strides = array<i32>} : memref<16x32xbf16, #tpu.memory_space<vmem>>, vector<16x8xbf16>,
    %c0_41 = arith.constant 0 : index
    %c0_42 = arith.constant 0 : index
    %c0_43 = arith.constant 0 : index
    %86 = vector.load %arg16[%c0_41, %c0_42, %c0_43] : memref<2x8x128xf32, #tpu.memory_space<vmem>>, vector<2x8x128xf32>
    %87 = arith.addf %86, %80 : vector<2x8x128xf32>
    %c0_44 = arith.constant 0 : index
    %c0_45 = arith.constant 0 : index
    %c0_46 = arith.constant 0 : index
    %88 = vector.load %arg16[%c0_44, %c0_45, %c0_46] : memref<2x8x128xf32, #tpu.memory_space<vmem>>, vector<2x8x128xf32>
    tpu.vector_store %arg16[%c0_44, %c0_45, %c0_46], %87 {strides = array<i32>} : memref<2x8x128xf32, #tpu.memory_space<vmem>>, vector<2x8x128xf32>,
    %89 = vector.extract_strided_slice %33 {offsets = [0, 0, 16], sizes = [2, 8, 8], strides = [1, 1, 1]} : vector<2x8x32xbf16> to vector<2x8x8xbf16>
    %90 = vector.extract_strided_slice %34 {offsets = [0, 0, 16], sizes = [2, 128, 8], strides = [1, 1, 1]} : vector<2x128x32xbf16> to vector<2x128x8xbf16>
    %91 = vector.extract_strided_slice %35 {offsets = [0, 0, 16], sizes = [2, 128, 8], strides = [1, 1, 1]} : vector<2x128x32xbf16> to vector<2x128x8xbf16>
    "tpu.trace_start"() <{level = 10 : i32, message = "bqd,bkd->bqk"}> : () -> ()
    %cst_47 = arith.constant dense<0.000000e+00> : vector<2x8x128xf32>
    %92 = tpu.matmul %89, %90, %cst_47 {dimension_numbers = #tpu.dot_dimension_numbers<[2], [2], [1], [1], [0, 0, 0, 1, 1, 1], [0], [0]>} : vector<2x8x8xbf16>, vector<2x128x8xbf16>, vector<2x8x128xf32> -> vector<2x8x128xf32>
    "tpu.trace_stop"() : () -> ()
    %93 = vector.broadcast %42 : vector<1x1x128xf32> to vector<2x8x128xf32>
    %94 = arith.addf %92, %93 : vector<2x8x128xf32>
    %cst_48 = arith.constant dense<0xFF800000> : vector<2x8xf32>
    %95 = vector.multi_reduction <maximumf>, %94, %cst_48 [2] : vector<2x8x128xf32> to vector<2x8xf32>
    %96 = vector.shape_cast %95 : vector<2x8xf32> to vector<2x8x1xf32>
    %97 = vector.broadcast %96 : vector<2x8x1xf32> to vector<2x8x128xf32>
    %98 = arith.subf %94, %97 : vector<2x8x128xf32>
    %99 = math.exp %98 : vector<2x8x128xf32>
    %cst_49 = arith.constant dense<0.000000e+00> : vector<2x8xf32>
    %100 = vector.multi_reduction <add>, %99, %cst_49 [2] : vector<2x8x128xf32> to vector<2x8xf32>
    %101 = vector.shape_cast %100 : vector<2x8xf32> to vector<2x8x1xf32>
    %102 = tpu.reciprocal %101 : vector<2x8x1xf32> -> vector<2x8x1xf32>
    %103 = vector.broadcast %102 : vector<2x8x1xf32> to vector<2x8x128xf32>
    %104 = arith.mulf %99, %103 : vector<2x8x128xf32>
    %105 = arith.truncf %104 : vector<2x8x128xf32> to vector<2x8x128xbf16>
    "tpu.trace_start"() <{level = 10 : i32, message = "bqk,bkd->bqd"}> : () -> ()
    %cst_50 = arith.constant dense<0.000000e+00> : vector<2x8x8xf32>
    %106 = tpu.matmul %105, %91, %cst_50 {dimension_numbers = #tpu.dot_dimension_numbers<[2], [1], [1], [2], [0, 0, 0, 1, 1, 2], [0], [0]>} : vector<2x8x128xbf16>, vector<2x128x8xbf16>, vector<2x8x8xf32> -> vector<2x8x8xf32>
    "tpu.trace_stop"() : () -> ()
    %107 = vector.shape_cast %106 : vector<2x8x8xf32> to vector<16x8xf32>
    %108 = arith.truncf %107 : vector<16x8xf32> to vector<16x8xbf16>
    %c0_51 = arith.constant 0 : index
    %c16 = arith.constant 16 : index
    %109 = vector.load %arg17[%c0_51, %c16] : memref<16x32xbf16, #tpu.memory_space<vmem>>, vector<16x8xbf16>
    tpu.vector_store %arg17[%c0_51, %c16], %108 {strides = array<i32>} : memref<16x32xbf16, #tpu.memory_space<vmem>>, vector<16x8xbf16>,
    %c0_52 = arith.constant 0 : index
    %c0_53 = arith.constant 0 : index
    %c0_54 = arith.constant 0 : index
    %110 = vector.load %arg16[%c0_52, %c0_53, %c0_54] : memref<2x8x128xf32, #tpu.memory_space<vmem>>, vector<2x8x128xf32>
    %111 = arith.addf %110, %104 : vector<2x8x128xf32>
    %c0_55 = arith.constant 0 : index
    %c0_56 = arith.constant 0 : index
    %c0_57 = arith.constant 0 : index
    %112 = vector.load %arg16[%c0_55, %c0_56, %c0_57] : memref<2x8x128xf32, #tpu.memory_space<vmem>>, vector<2x8x128xf32>
    tpu.vector_store %arg16[%c0_55, %c0_56, %c0_57], %111 {strides = array<i32>} : memref<2x8x128xf32, #tpu.memory_space<vmem>>, vector<2x8x128xf32>,
    %113 = vector.extract_strided_slice %33 {offsets = [0, 0, 24], sizes = [2, 8, 8], strides = [1, 1, 1]} : vector<2x8x32xbf16> to vector<2x8x8xbf16>
    %114 = vector.extract_strided_slice %34 {offsets = [0, 0, 24], sizes = [2, 128, 8], strides = [1, 1, 1]} : vector<2x128x32xbf16> to vector<2x128x8xbf16>
    %115 = vector.extract_strided_slice %35 {offsets = [0, 0, 24], sizes = [2, 128, 8], strides = [1, 1, 1]} : vector<2x128x32xbf16> to vector<2x128x8xbf16>
    "tpu.trace_start"() <{level = 10 : i32, message = "bqd,bkd->bqk"}> : () -> ()
    %cst_58 = arith.constant dense<0.000000e+00> : vector<2x8x128xf32>
    %116 = tpu.matmul %113, %114, %cst_58 {dimension_numbers = #tpu.dot_dimension_numbers<[2], [2], [1], [1], [0, 0, 0, 1, 1, 1], [0], [0]>} : vector<2x8x8xbf16>, vector<2x128x8xbf16>, vector<2x8x128xf32> -> vector<2x8x128xf32>
    "tpu.trace_stop"() : () -> ()
    %117 = vector.broadcast %42 : vector<1x1x128xf32> to vector<2x8x128xf32>
    %118 = arith.addf %116, %117 : vector<2x8x128xf32>
    %cst_59 = arith.constant dense<0xFF800000> : vector<2x8xf32>
    %119 = vector.multi_reduction <maximumf>, %118, %cst_59 [2] : vector<2x8x128xf32> to vector<2x8xf32>
    %120 = vector.shape_cast %119 : vector<2x8xf32> to vector<2x8x1xf32>
    %121 = vector.broadcast %120 : vector<2x8x1xf32> to vector<2x8x128xf32>
    %122 = arith.subf %118, %121 : vector<2x8x128xf32>
    %123 = math.exp %122 : vector<2x8x128xf32>
    %cst_60 = arith.constant dense<0.000000e+00> : vector<2x8xf32>
    %124 = vector.multi_reduction <add>, %123, %cst_60 [2] : vector<2x8x128xf32> to vector<2x8xf32>
    %125 = vector.shape_cast %124 : vector<2x8xf32> to vector<2x8x1xf32>
    %126 = tpu.reciprocal %125 : vector<2x8x1xf32> -> vector<2x8x1xf32>
    %127 = vector.broadcast %126 : vector<2x8x1xf32> to vector<2x8x128xf32>
    %128 = arith.mulf %123, %127 : vector<2x8x128xf32>
    %129 = arith.truncf %128 : vector<2x8x128xf32> to vector<2x8x128xbf16>
    "tpu.trace_start"() <{level = 10 : i32, message = "bqk,bkd->bqd"}> : () -> ()
    %cst_61 = arith.constant dense<0.000000e+00> : vector<2x8x8xf32>
    %130 = tpu.matmul %129, %115, %cst_61 {dimension_numbers = #tpu.dot_dimension_numbers<[2], [1], [1], [2], [0, 0, 0, 1, 1, 2], [0], [0]>} : vector<2x8x128xbf16>, vector<2x128x8xbf16>, vector<2x8x8xf32> -> vector<2x8x8xf32>
    "tpu.trace_stop"() : () -> ()
    %131 = vector.shape_cast %130 : vector<2x8x8xf32> to vector<16x8xf32>
    %132 = arith.truncf %131 : vector<16x8xf32> to vector<16x8xbf16>
    %c0_62 = arith.constant 0 : index
    %c24 = arith.constant 24 : index
    %133 = vector.load %arg17[%c0_62, %c24] : memref<16x32xbf16, #tpu.memory_space<vmem>>, vector<16x8xbf16>
    tpu.vector_store %arg17[%c0_62, %c24], %132 {strides = array<i32>} : memref<16x32xbf16, #tpu.memory_space<vmem>>, vector<16x8xbf16>,
    %c0_63 = arith.constant 0 : index
    %c0_64 = arith.constant 0 : index
    %c0_65 = arith.constant 0 : index
    %134 = vector.load %arg16[%c0_63, %c0_64, %c0_65] : memref<2x8x128xf32, #tpu.memory_space<vmem>>, vector<2x8x128xf32>
    %135 = arith.addf %134, %128 : vector<2x8x128xf32>
    %c0_66 = arith.constant 0 : index
    %c0_67 = arith.constant 0 : index
    %c0_68 = arith.constant 0 : index
    %136 = vector.load %arg16[%c0_66, %c0_67, %c0_68] : memref<2x8x128xf32, #tpu.memory_space<vmem>>, vector<2x8x128xf32>
    tpu.vector_store %arg16[%c0_66, %c0_67, %c0_68], %135 {strides = array<i32>} : memref<2x8x128xf32, #tpu.memory_space<vmem>>, vector<2x8x128xf32>,
    %c0_69 = arith.constant 0 : index
    %c0_70 = arith.constant 0 : index
    %c0_71 = arith.constant 0 : index
    %137 = vector.load %arg16[%c0_69, %c0_70, %c0_71] : memref<2x8x128xf32, #tpu.memory_space<vmem>>, vector<2x8x128xf32>
    %cst_72 = arith.constant 2.500000e-01 : f32
    %138 = vector.broadcast %cst_72 : f32 to vector<2x8x128xf32>
    %139 = arith.mulf %137, %138 : vector<2x8x128xf32>
    %c0_73 = arith.constant 0 : index
    %c0_74 = arith.constant 0 : index
    %c0_75 = arith.constant 0 : index
    %140 = vector.load %arg16[%c0_73, %c0_74, %c0_75] : memref<2x8x128xf32, #tpu.memory_space<vmem>>, vector<2x8x128xf32>
    tpu.vector_store %arg16[%c0_73, %c0_74, %c0_75], %139 {strides = array<i32>} : memref<2x8x128xf32, #tpu.memory_space<vmem>>, vector<2x8x128xf32>,
    %c0_76 = arith.constant 0 : index
    %c0_77 = arith.constant 0 : index
    %141 = vector.load %arg17[%c0_76, %c0_77] : memref<16x32xbf16, #tpu.memory_space<vmem>>, vector<16x32xbf16>
    %c0_78 = arith.constant 0 : index
    %c0_79 = arith.constant 0 : index
    %142 = vector.load %arg11[%c0_78, %c0_79] : memref<32x32xbf16, #tpu.memory_space<vmem>>, vector<32x32xbf16>
    %cst_80 = arith.constant dense<0.000000e+00> : vector<16x32xf32>
    %143 = tpu.matmul %141, %142, %cst_80 {dimension_numbers = #tpu.dot_dimension_numbers<[1], [0], [0], [1], [0, 0, 1, 1], [], []>} : vector<16x32xbf16>, vector<32x32xbf16>, vector<16x32xf32> -> vector<16x32xf32>
    %c0_81 = arith.constant 0 : index
    %c0_82 = arith.constant 0 : index
    %144 = vector.load %arg12[%c0_81, %c0_82] : memref<1x32xf32, #tpu.memory_space<vmem>>, vector<1x32xf32>
    %145 = vector.broadcast %144 : vector<1x32xf32> to vector<16x32xf32>
    %146 = arith.addf %143, %145 : vector<16x32xf32>
    %147 = vector.shape_cast %1 : vector<2x8x32xf32> to vector<16x32xf32>
    %148 = arith.addf %147, %146 : vector<16x32xf32>
    %cst_83 = arith.constant dense<0.000000e+00> : vector<16xf32>
    %149 = vector.multi_reduction <add>, %148, %cst_83 [1] : vector<16x32xf32> to vector<16xf32>
    %150 = vector.shape_cast %149 : vector<16xf32> to vector<16x1xf32>
    %cst_84 = arith.constant 3.200000e+01 : f32
    %151 = vector.broadcast %cst_84 : f32 to vector<16x1xf32>
    %152 = arith.divf %150, %151 : vector<16x1xf32>
    %153 = vector.broadcast %152 : vector<16x1xf32> to vector<16x32xf32>
    %154 = arith.subf %148, %153 : vector<16x32xf32>
    %155 = arith.mulf %154, %154 : vector<16x32xf32>
    %cst_85 = arith.constant dense<0.000000e+00> : vector<16xf32>
    %156 = vector.multi_reduction <add>, %155, %cst_85 [1] : vector<16x32xf32> to vector<16xf32>
    %157 = vector.shape_cast %156 : vector<16xf32> to vector<16x1xf32>
    %cst_86 = arith.constant 3.200000e+01 : f32
    %158 = vector.broadcast %cst_86 : f32 to vector<16x1xf32>
    %159 = arith.divf %157, %158 : vector<16x1xf32>
    %cst_87 = arith.constant 9.99999974E-6 : f32
    %160 = vector.broadcast %cst_87 : f32 to vector<16x1xf32>
    %161 = arith.addf %159, %160 : vector<16x1xf32>
    %162 = math.rsqrt %161 : vector<16x1xf32>
    %163 = vector.broadcast %162 : vector<16x1xf32> to vector<16x32xf32>
    %164 = arith.mulf %154, %163 : vector<16x32xf32>
    %c0_88 = arith.constant 0 : index
    %c0_89 = arith.constant 0 : index
    %165 = vector.load %arg13[%c0_88, %c0_89] : memref<1x32xf32, #tpu.memory_space<vmem>>, vector<1x32xf32>
    %166 = vector.broadcast %165 : vector<1x32xf32> to vector<16x32xf32>
    %167 = arith.mulf %164, %166 : vector<16x32xf32>
    %c0_90 = arith.constant 0 : index
    %c0_91 = arith.constant 0 : index
    %168 = vector.load %arg14[%c0_90, %c0_91] : memref<1x32xf32, #tpu.memory_space<vmem>>, vector<1x32xf32>
    %169 = vector.broadcast %168 : vector<1x32xf32> to vector<16x32xf32>
    %170 = arith.addf %167, %169 : vector<16x32xf32>
    %171 = vector.shape_cast %170 : vector<16x32xf32> to vector<2x8x32xf32>
    %c0_92 = arith.constant 0 : index
    %c0_93 = arith.constant 0 : index
    %c0_94 = arith.constant 0 : index
    %172 = vector.load %arg15[%c0_92, %c0_93, %c0_94] : memref<2x8x32xf32, #tpu.memory_space<vmem>>, vector<2x8x32xf32>
    tpu.vector_store %arg15[%c0_92, %c0_93, %c0_94], %171 {strides = array<i32>} : memref<2x8x32xf32, #tpu.memory_space<vmem>>, vector<2x8x32xf32>,
    return
  }
  func.func @transform_0(%arg0: i32) -> (i32, i32, i32) {
    %c0_i32 = arith.constant 0 : i32
    %c0_i32_0 = arith.constant 0 : i32
    %c0_i32_1 = arith.constant 0 : i32
    return %arg0, %c0_i32, %c0_i32_0 : i32, i32, i32
  }
  func.func @transform_1(%arg0: i32) -> (i32, i32, i32) {
    %c0_i32 = arith.constant 0 : i32
    %c0_i32_0 = arith.constant 0 : i32
    %c0_i32_1 = arith.constant 0 : i32
    return %arg0, %c0_i32, %c0_i32_0 : i32, i32, i32
  }
  func.func @transform_2(%arg0: i32) -> (i32, i32, i32) {
    %c0_i32 = arith.constant 0 : i32
    %c0_i32_0 = arith.constant 0 : i32
    %c0_i32_1 = arith.constant 0 : i32
    return %arg0, %c0_i32, %c0_i32_0 : i32, i32, i32
  }
  func.func @transform_3(%arg0: i32) -> (i32, i32, i32) {
    %c0_i32 = arith.constant 0 : i32
    %c0_i32_0 = arith.constant 0 : i32
    %c0_i32_1 = arith.constant 0 : i32
    return %arg0, %c0_i32, %c0_i32_0 : i32, i32, i32
  }
  func.func @transform_4(%arg0: i32) -> (i32, i32) {
    %c0_i32 = arith.constant 0 : i32
    %c0_i32_0 = arith.constant 0 : i32
    %c0_i32_1 = arith.constant 0 : i32
    return %c0_i32, %c0_i32_0 : i32, i32
  }
  func.func @transform_5(%arg0: i32) -> (i32, i32) {
    %c0_i32 = arith.constant 0 : i32
    %c0_i32_0 = arith.constant 0 : i32
    %c0_i32_1 = arith.constant 0 : i32
    return %c0_i32, %c0_i32_0 : i32, i32
  }
  func.func @transform_6(%arg0: i32) -> (i32, i32) {
    %c0_i32 = arith.constant 0 : i32
    %c0_i32_0 = arith.constant 0 : i32
    %c0_i32_1 = arith.constant 0 : i32
    return %c0_i32, %c0_i32_0 : i32, i32
  }
  func.func @transform_7(%arg0: i32) -> (i32, i32) {
    %c0_i32 = arith.constant 0 : i32
    %c0_i32_0 = arith.constant 0 : i32
    %c0_i32_1 = arith.constant 0 : i32
    return %c0_i32, %c0_i32_0 : i32, i32
  }
  func.func @transform_8(%arg0: i32) -> (i32, i32) {
    %c0_i32 = arith.constant 0 : i32
    %c0_i32_0 = arith.constant 0 : i32
    %c0_i32_1 = arith.constant 0 : i32
    return %c0_i32, %c0_i32_0 : i32, i32
  }
  func.func @transform_9(%arg0: i32) -> (i32, i32) {
    %c0_i32 = arith.constant 0 : i32
    %c0_i32_0 = arith.constant 0 : i32
    %c0_i32_1 = arith.constant 0 : i32
    return %c0_i32, %c0_i32_0 : i32, i32
  }
  func.func @transform_10(%arg0: i32) -> (i32, i32) {
    %c0_i32 = arith.constant 0 : i32
    %c0_i32_0 = arith.constant 0 : i32
    %c0_i32_1 = arith.constant 0 : i32
    return %c0_i32, %c0_i32_0 : i32, i32
  }
  func.func @transform_11(%arg0: i32) -> (i32, i32) {
    %c0_i32 = arith.constant 0 : i32
    %c0_i32_0 = arith.constant 0 : i32
    %c0_i32_1 = arith.constant 0 : i32
    return %c0_i32, %c0_i32_0 : i32, i32
  }
  func.func @transform_12(%arg0: i32) -> (i32, i32) {
    %c0_i32 = arith.constant 0 : i32
    %c0_i32_0 = arith.constant 0 : i32
    %c0_i32_1 = arith.constant 0 : i32
    return %c0_i32, %c0_i32_0 : i32, i32
  }
  func.func @transform_13(%arg0: i32) -> (i32, i32) {
    %c0_i32 = arith.constant 0 : i32
    %c0_i32_0 = arith.constant 0 : i32
    %c0_i32_1 = arith.constant 0 : i32
    return %c0_i32, %c0_i32_0 : i32, i32
  }
  func.func @transform_14(%arg0: i32) -> (i32, i32, i32) {
    %c0_i32 = arith.constant 0 : i32
    %c0_i32_0 = arith.constant 0 : i32
    %c0_i32_1 = arith.constant 0 : i32
    return %arg0, %c0_i32, %c0_i32_0 : i32, i32, i32
  }
  func.func @transform_15(%arg0: i32) -> (i32, i32, i32) {
    %c0_i32 = arith.constant 0 : i32
    %c0_i32_0 = arith.constant 0 : i32
    %c0_i32_1 = arith.constant 0 : i32
    return %arg0, %c0_i32, %c0_i32_0 : i32, i32, i32
  }
}

</mosaic_0001>

<llo_original>
// kernel: tpu_custom_call.1
$region0: #{tpu_custom_call.1}
  #allocation0 [shape = 'u32[]', space=smem, size = 0x4, offset = 0x4, fixed_abs, tag = 'smem constant byte address 0x4 - core index']
  #allocation1 [shape = 'u32[144,128]{1,0:T(1,128)}', space=vmem, size = 0x12000, scoped, tag = 'internal scratch']
  #allocation2 [shape = 'bf16[16,32]{1,0:T(8,128)(2,1)}', space=vmem, size = 0x1000, scoped, tag = 'scratch operand']
  %s0 = inlined_call_operand.vmem [shape: bf16[2,8,32], index: 0, kind: input, shape index: {}]
  %s1 = inlined_call_operand.vmem [shape: bf16[2,8,32], index: 1, kind: input, shape index: {}]
  %s2 = inlined_call_operand.vmem [shape: bf16[2,128,32], index: 2, kind: input, shape index: {}]
  %s3 = inlined_call_operand.vmem [shape: bf16[2,128,32], index: 3, kind: input, shape index: {}]
  %s4 = inlined_call_operand.vmem [shape: bf16[32,32], index: 4, kind: input, shape index: {}]
  %s5 = inlined_call_operand.vmem [shape: bf16[32,32], index: 5, kind: input, shape index: {}]
  %s6 = inlined_call_operand.vmem [shape: bf16[32,32], index: 6, kind: input, shape index: {}]
  %s7 = inlined_call_operand.vmem [shape: f32[1,32], index: 7, kind: input, shape index: {}]
  %s8 = inlined_call_operand.vmem [shape: f32[1,32], index: 8, kind: input, shape index: {}]
  %s9 = inlined_call_operand.vmem [shape: f32[1,32], index: 9, kind: input, shape index: {}]
  %s10 = inlined_call_operand.vmem [shape: bf16[32,32], index: 10, kind: input, shape index: {}]
  %s11 = inlined_call_operand.vmem [shape: f32[1,32], index: 11, kind: input, shape index: {}]
  %s12 = inlined_call_operand.vmem [shape: f32[1,32], index: 12, kind: input, shape index: {}]
  %s13 = inlined_call_operand.vmem [shape: f32[1,32], index: 13, kind: input, shape index: {}]
  %s14 = inlined_call_operand.hbm [shape: f32[2,8,32], index: 14, kind: output, shape index: {0}]
  %s15 = inlined_call_operand.hbm [shape: f32[2,8,128], index: 15, kind: output, shape index: {1}]
  %16 = xla_tuple %s14, %s15
  %s17 = sld [smem:[#allocation0]]
  $region74: #{tpu_custom_call.1} parent=0
    _
  %s19 = ssub.s32 1, %s17
  %s20 = scalar_select 0, %s19, %s17
  $region1: #{tpu_custom_call.1} parent=0
    #allocation3 [shape = 'u8[8192]{0}', space=vmem, size = 0x2000, scoped, tag = 'output window, operand 0, single buffered']
    #allocation4 [shape = 's32[1]{0}', space=sflag, size = 0x4, scoped, tag = 'scoped memory for tpu_custom_call.1']
    #allocation5 [shape = 'u8[8192]{0}', space=vmem, size = 0x2000, scoped, tag = 'output window, operand 1, single buffered']
    #allocation6 [shape = 's32[1]{0}', space=sflag, size = 0x4, scoped, tag = 'scoped memory for tpu_custom_call.1']
    %21 = vsyncpa [#allocation4], 0
    %22 = vsyncpa [#allocation6], 0
    // Predicated region
    $region2: #{tpu_custom_call.1} parent=1 // pred_check
      _
    $region3: #{tpu_custom_call.1} parent=1 // pred_check_branch
      %24 = sbr.rel (0) target = $region5
    $region4: #{tpu_custom_call.1} parent=1 // pred_region
      _
    $region5: #{tpu_custom_call.1} parent=1 // pred_fallthru
      _
    // Predicated region
    $region6: #{tpu_custom_call.1} parent=1 // pred_check
      _
    $region7: #{tpu_custom_call.1} parent=1 // pred_check_branch
      %26 = sbr.rel (0) target = $region9
    $region8: #{tpu_custom_call.1} parent=1 // pred_region
      _
    $region9: #{tpu_custom_call.1} parent=1 // pred_fallthru
      _
    // Predicated region
    $region10: #{tpu_custom_call.1} parent=1 // pred_check
      _
    $region11: #{tpu_custom_call.1} parent=1 // pred_check_branch
      %28 = sbr.rel (0) target = $region13
    $region12: #{tpu_custom_call.1} parent=1 // pred_region
      _
    $region13: #{tpu_custom_call.1} parent=1 // pred_fallthru
      _
    // Predicated region
    $region14: #{tpu_custom_call.1} parent=1 // pred_check
      _
    $region15: #{tpu_custom_call.1} parent=1 // pred_check_branch
      %30 = sbr.rel (0) target = $region17
    $region16: #{tpu_custom_call.1} parent=1 // pred_region
      _
    $region17: #{tpu_custom_call.1} parent=1 // pred_fallthru
      _
    // Predicated region
    $region18: #{tpu_custom_call.1} parent=1 // pred_check
      _
    $region19: #{tpu_custom_call.1} parent=1 // pred_check_branch
      %32 = sbr.rel (0) target = $region21
    $region20: #{tpu_custom_call.1} parent=1 // pred_region
      _
    $region21: #{tpu_custom_call.1} parent=1 // pred_fallthru
      _
    // Predicated region
    $region22: #{tpu_custom_call.1} parent=1 // pred_check
      _
    $region23: #{tpu_custom_call.1} parent=1 // pred_check_branch
      %34 = sbr.rel (0) target = $region25
    $region24: #{tpu_custom_call.1} parent=1 // pred_region
      _
    $region25: #{tpu_custom_call.1} parent=1 // pred_fallthru
      _
    // Predicated region
    $region26: #{tpu_custom_call.1} parent=1 // pred_check
      _
    $region27: #{tpu_custom_call.1} parent=1 // pred_check_branch
      %36 = sbr.rel (0) target = $region29
    $region28: #{tpu_custom_call.1} parent=1 // pred_region
      _
    $region29: #{tpu_custom_call.1} parent=1 // pred_fallthru
      _
    // Predicated region
    $region30: #{tpu_custom_call.1} parent=1 // pred_check
      _
    $region31: #{tpu_custom_call.1} parent=1 // pred_check_branch
      %38 = sbr.rel (0) target = $region33
    $region32: #{tpu_custom_call.1} parent=1 // pred_region
      _
    $region33: #{tpu_custom_call.1} parent=1 // pred_fallthru
      _
    // Predicated region
    $region34: #{tpu_custom_call.1} parent=1 // pred_check
      _
    $region35: #{tpu_custom_call.1} parent=1 // pred_check_branch
      %40 = sbr.rel (0) target = $region37
    $region36: #{tpu_custom_call.1} parent=1 // pred_region
      _
    $region37: #{tpu_custom_call.1} parent=1 // pred_fallthru
      _
    // Predicated region
    $region38: #{tpu_custom_call.1} parent=1 // pred_check
      _
    $region39: #{tpu_custom_call.1} parent=1 // pred_check_branch
      %42 = sbr.rel (0) target = $region41
    $region40: #{tpu_custom_call.1} parent=1 // pred_region
      _
    $region41: #{tpu_custom_call.1} parent=1 // pred_fallthru
      _
    // Predicated region
    $region42: #{tpu_custom_call.1} parent=1 // pred_check
      _
    $region43: #{tpu_custom_call.1} parent=1 // pred_check_branch
      %44 = sbr.rel (0) target = $region45
    $region44: #{tpu_custom_call.1} parent=1 // pred_region
      _
    $region45: #{tpu_custom_call.1} parent=1 // pred_fallthru
      _
    // Predicated region
    $region46: #{tpu_custom_call.1} parent=1 // pred_check
      _
    $region47: #{tpu_custom_call.1} parent=1 // pred_check_branch
      %46 = sbr.rel (0) target = $region49
    $region48: #{tpu_custom_call.1} parent=1 // pred_region
      _
    $region49: #{tpu_custom_call.1} parent=1 // pred_fallthru
      _
    // Predicated region
    $region50: #{tpu_custom_call.1} parent=1 // pred_check
      _
    $region51: #{tpu_custom_call.1} parent=1 // pred_check_branch
      %48 = sbr.rel (0) target = $region53
    $region52: #{tpu_custom_call.1} parent=1 // pred_region
      _
    $region53: #{tpu_custom_call.1} parent=1 // pred_fallthru
      _
    // Predicated region
    $region54: #{tpu_custom_call.1} parent=1 // pred_check
      _
    $region55: #{tpu_custom_call.1} parent=1 // pred_check_branch
      %50 = sbr.rel (0) target = $region57
    $region56: #{tpu_custom_call.1} parent=1 // pred_region
      _
    $region57: #{tpu_custom_call.1} parent=1 // pred_fallthru
      _
    %v52 = vld [vmem:[%s0] sm:$0xf]
    %v53 = vld [vmem:[%s0 + $0x4] sm:$0xf]
    %v54 = vunpack.c.l.bf16 %v52
    %v55 = vunpack.c.l.bf16 %v53
    %v56 = vld [vmem:[%s1] sm:$0xf]
    %v57 = vld [vmem:[%s1 + $0x4] sm:$0xf]
    %v58 = vunpack.c.l.bf16 %v56
    %v59 = vunpack.c.l.bf16 %v57
    %v60 = vadd.f32 %v54, %v58
    %v61 = vadd.f32 %v55, %v59
    %v62 = vpack.c.bf16 %v61, %v60
    %v63 = vld [vmem:[%s2] sm:$0xf]
    %v64 = vld [vmem:[%s2 + $0x4] sm:$0xf]
    %v65 = vld [vmem:[%s2 + $0x8] sm:$0xf]
    %v66 = vld [vmem:[%s2 + $0xc] sm:$0xf]
    %v67 = vld [vmem:[%s2 + $0x10] sm:$0xf]
    %v68 = vld [vmem:[%s2 + $0x14] sm:$0xf]
    %v69 = vld [vmem:[%s2 + $0x18] sm:$0xf]
    %v70 = vld [vmem:[%s2 + $0x1c] sm:$0xf]
    %v71 = vld [vmem:[%s2 + $0x20] sm:$0xf]
    %v72 = vld [vmem:[%s2 + $0x24] sm:$0xf]
    %v73 = vld [vmem:[%s2 + $0x28] sm:$0xf]
    %v74 = vld [vmem:[%s2 + $0x2c] sm:$0xf]
    %v75 = vld [vmem:[%s2 + $0x30] sm:$0xf]
    %v76 = vld [vmem:[%s2 + $0x34] sm:$0xf]
    %v77 = vld [vmem:[%s2 + $0x38] sm:$0xf]
    %v78 = vld [vmem:[%s2 + $0x3c] sm:$0xf]
    %v79 = vld [vmem:[%s2 + $0x40] sm:$0xf]
    %v80 = vld [vmem:[%s2 + $0x44] sm:$0xf]
    %v81 = vld [vmem:[%s2 + $0x48] sm:$0xf]
    %v82 = vld [vmem:[%s2 + $0x4c] sm:$0xf]
    %v83 = vld [vmem:[%s2 + $0x50] sm:$0xf]
    %v84 = vld [vmem:[%s2 + $0x54] sm:$0xf]
    %v85 = vld [vmem:[%s2 + $0x58] sm:$0xf]
    %v86 = vld [vmem:[%s2 + $0x5c] sm:$0xf]
    %v87 = vld [vmem:[%s2 + $0x60] sm:$0xf]
    %v88 = vld [vmem:[%s2 + $0x64] sm:$0xf]
    %v89 = vld [vmem:[%s2 + $0x68] sm:$0xf]
    %v90 = vld [vmem:[%s2 + $0x6c] sm:$0xf]
    %v91 = vld [vmem:[%s2 + $0x70] sm:$0xf]
    %v92 = vld [vmem:[%s2 + $0x74] sm:$0xf]
    %v93 = vld [vmem:[%s2 + $0x78] sm:$0xf]
    %v94 = vld [vmem:[%s2 + $0x7c] sm:$0xf]
    %v95 = vunpack.c.l.bf16 %v63
    %v96 = vunpack.c.l.bf16 %v64
    %v97 = vunpack.c.l.bf16 %v65
    %v98 = vunpack.c.l.bf16 %v66
    %v99 = vunpack.c.l.bf16 %v67
    %v100 = vunpack.c.l.bf16 %v68
    %v101 = vunpack.c.l.bf16 %v69
    %v102 = vunpack.c.l.bf16 %v70
    %v103 = vunpack.c.l.bf16 %v71
    %v104 = vunpack.c.l.bf16 %v72
    %v105 = vunpack.c.l.bf16 %v73
    %v106 = vunpack.c.l.bf16 %v74
    %v107 = vunpack.c.l.bf16 %v75
    %v108 = vunpack.c.l.bf16 %v76
    %v109 = vunpack.c.l.bf16 %v77
    %v110 = vunpack.c.l.bf16 %v78
    %v111 = vunpack.c.l.bf16 %v79
    %v112 = vunpack.c.l.bf16 %v80
    %v113 = vunpack.c.l.bf16 %v81
    %v114 = vunpack.c.l.bf16 %v82
    %v115 = vunpack.c.l.bf16 %v83
    %v116 = vunpack.c.l.bf16 %v84
    %v117 = vunpack.c.l.bf16 %v85
    %v118 = vunpack.c.l.bf16 %v86
    %v119 = vunpack.c.l.bf16 %v87
    %v120 = vunpack.c.l.bf16 %v88
    %v121 = vunpack.c.l.bf16 %v89
    %v122 = vunpack.c.l.bf16 %v90
    %v123 = vunpack.c.l.bf16 %v91
    %v124 = vunpack.c.l.bf16 %v92
    %v125 = vunpack.c.l.bf16 %v93
    %v126 = vunpack.c.l.bf16 %v94
    %v127 = vld [vmem:[%s3] sm:$0xf]
    %v128 = vld [vmem:[%s3 + $0x4] sm:$0xf]
    %v129 = vld [vmem:[%s3 + $0x8] sm:$0xf]
    %v130 = vld [vmem:[%s3 + $0xc] sm:$0xf]
    %v131 = vld [vmem:[%s3 + $0x10] sm:$0xf]
    %v132 = vld [vmem:[%s3 + $0x14] sm:$0xf]
    %v133 = vld [vmem:[%s3 + $0x18] sm:$0xf]
    %v134 = vld [vmem:[%s3 + $0x1c] sm:$0xf]
    %v135 = vld [vmem:[%s3 + $0x20] sm:$0xf]
    %v136 = vld [vmem:[%s3 + $0x24] sm:$0xf]
    %v137 = vld [vmem:[%s3 + $0x28] sm:$0xf]
    %v138 = vld [vmem:[%s3 + $0x2c] sm:$0xf]
    %v139 = vld [vmem:[%s3 + $0x30] sm:$0xf]
    %v140 = vld [vmem:[%s3 + $0x34] sm:$0xf]
    %v141 = vld [vmem:[%s3 + $0x38] sm:$0xf]
    %v142 = vld [vmem:[%s3 + $0x3c] sm:$0xf]
    %v143 = vld [vmem:[%s3 + $0x40] sm:$0xf]
    %v144 = vld [vmem:[%s3 + $0x44] sm:$0xf]
    %v145 = vld [vmem:[%s3 + $0x48] sm:$0xf]
    %v146 = vld [vmem:[%s3 + $0x4c] sm:$0xf]
    %v147 = vld [vmem:[%s3 + $0x50] sm:$0xf]
    %v148 = vld [vmem:[%s3 + $0x54] sm:$0xf]
    %v149 = vld [vmem:[%s3 + $0x58] sm:$0xf]
    %v150 = vld [vmem:[%s3 + $0x5c] sm:$0xf]
    %v151 = vld [vmem:[%s3 + $0x60] sm:$0xf]
    %v152 = vld [vmem:[%s3 + $0x64] sm:$0xf]
    %v153 = vld [vmem:[%s3 + $0x68] sm:$0xf]
    %v154 = vld [vmem:[%s3 + $0x6c] sm:$0xf]
    %v155 = vld [vmem:[%s3 + $0x70] sm:$0xf]
    %v156 = vld [vmem:[%s3 + $0x74] sm:$0xf]
    %v157 = vld [vmem:[%s3 + $0x78] sm:$0xf]
    %v158 = vld [vmem:[%s3 + $0x7c] sm:$0xf]
    %v159 = vunpack.c.l.bf16 %v127
    %v160 = vunpack.c.l.bf16 %v128
    %v161 = vunpack.c.l.bf16 %v129
    %v162 = vunpack.c.l.bf16 %v130
    %v163 = vunpack.c.l.bf16 %v131
    %v164 = vunpack.c.l.bf16 %v132
    %v165 = vunpack.c.l.bf16 %v133
    %v166 = vunpack.c.l.bf16 %v134
    %v167 = vunpack.c.l.bf16 %v135
    %v168 = vunpack.c.l.bf16 %v136
    %v169 = vunpack.c.l.bf16 %v137
    %v170 = vunpack.c.l.bf16 %v138
    %v171 = vunpack.c.l.bf16 %v139
    %v172 = vunpack.c.l.bf16 %v140
    %v173 = vunpack.c.l.bf16 %v141
    %v174 = vunpack.c.l.bf16 %v142
    %v175 = vunpack.c.l.bf16 %v143
    %v176 = vunpack.c.l.bf16 %v144
    %v177 = vunpack.c.l.bf16 %v145
    %v178 = vunpack.c.l.bf16 %v146
    %v179 = vunpack.c.l.bf16 %v147
    %v180 = vunpack.c.l.bf16 %v148
    %v181 = vunpack.c.l.bf16 %v149
    %v182 = vunpack.c.l.bf16 %v150
    %v183 = vunpack.c.l.bf16 %v151
    %v184 = vunpack.c.l.bf16 %v152
    %v185 = vunpack.c.l.bf16 %v153
    %v186 = vunpack.c.l.bf16 %v154
    %v187 = vunpack.c.l.bf16 %v155
    %v188 = vunpack.c.l.bf16 %v156
    %v189 = vunpack.c.l.bf16 %v157
    %v190 = vunpack.c.l.bf16 %v158
    %v191 = vadd.f32 %v95, %v159
    %v192 = vadd.f32 %v96, %v160
    %v193 = vadd.f32 %v97, %v161
    %v194 = vadd.f32 %v98, %v162
    %v195 = vadd.f32 %v99, %v163
    %v196 = vadd.f32 %v100, %v164
    %v197 = vadd.f32 %v101, %v165
    %v198 = vadd.f32 %v102, %v166
    %v199 = vadd.f32 %v103, %v167
    %v200 = vadd.f32 %v104, %v168
    %v201 = vadd.f32 %v105, %v169
    %v202 = vadd.f32 %v106, %v170
    %v203 = vadd.f32 %v107, %v171
    %v204 = vadd.f32 %v108, %v172
    %v205 = vadd.f32 %v109, %v173
    %v206 = vadd.f32 %v110, %v174
    %v207 = vadd.f32 %v111, %v175
    %v208 = vadd.f32 %v112, %v176
    %v209 = vadd.f32 %v113, %v177
    %v210 = vadd.f32 %v114, %v178
    %v211 = vadd.f32 %v115, %v179
    %v212 = vadd.f32 %v116, %v180
    %v213 = vadd.f32 %v117, %v181
    %v214 = vadd.f32 %v118, %v182
    %v215 = vadd.f32 %v119, %v183
    %v216 = vadd.f32 %v120, %v184
    %v217 = vadd.f32 %v121, %v185
    %v218 = vadd.f32 %v122, %v186
    %v219 = vadd.f32 %v123, %v187
    %v220 = vadd.f32 %v124, %v188
    %v221 = vadd.f32 %v125, %v189
    %v222 = vadd.f32 %v126, %v190
    %v223 = vpack.c.bf16 %v192, %v191
    %v224 = vpack.c.bf16 %v194, %v193
    %v225 = vpack.c.bf16 %v196, %v195
    %v226 = vpack.c.bf16 %v198, %v197
    %v227 = vpack.c.bf16 %v200, %v199
    %v228 = vpack.c.bf16 %v202, %v201
    %v229 = vpack.c.bf16 %v204, %v203
    %v230 = vpack.c.bf16 %v206, %v205
    %v231 = vpack.c.bf16 %v208, %v207
    %v232 = vpack.c.bf16 %v210, %v209
    %v233 = vpack.c.bf16 %v212, %v211
    %v234 = vpack.c.bf16 %v214, %v213
    %v235 = vpack.c.bf16 %v216, %v215
    %v236 = vpack.c.bf16 %v218, %v217
    %v237 = vpack.c.bf16 %v220, %v219
    %v238 = vpack.c.bf16 %v222, %v221
    %v239 = vld [vmem:[%s4] sm:$0xf]
    %v240 = vld [vmem:[%s4 + $0x4] sm:$0xf]
    %v241 = vld [vmem:[%s4 + $0x8] sm:$0xf]
    %v242 = vld [vmem:[%s4 + $0xc] sm:$0xf]
    %v243 = vld [vmem:[%s7] sm:$0x1]
    %v245 = vlaneseq
    %v246 = vshrl.u32 %v245, 7
    %v247 = vsub.s32 0, %v246
    %v248 = vrot.slane %v243, %v247
    %v254 = vunpack.c.l.b16 %v239
    %v255 = vunpack.c.l.b16 %v240
    %v256 = vunpack.c.l.b16 %v241
    %v257 = vunpack.c.l.b16 %v242
    %v258 = vpack.c.b16 %v255, %v254
    %v259 = vpack.c.b16 %v257, %v256
    %vm262 = vcmask 261120
    %v264 = vsel %vm262, %v62, 0
    %266 = vmatprep.subr.bf16.mxu0 0
    %267 = vmatpush1.bf16.msra.mxu0 0
    %268 = vmatprep.subr.bf16.mxu0 0
    %269 = vmatpush1.bf16.msra.mxu0 0
    %270 = vmatprep.subr.bf16.mxu0 0
    %271 = vmatpush1.bf16.msra.mxu0 0
    %272 = vmatprep.subr.bf16.mxu0 0
    %273 = vmatpush1.bf16.msra.mxu0 0
    %274 = vmatprep.subr.bf16.mxu0 0
    %275 = vmatpush1.bf16.msra.mxu0 0
    %276 = vmatprep.subr.bf16.mxu0 0
    %277 = vmatpush1.bf16.msra.mxu0 0
    %278 = vmatprep.subr.bf16.mxu0 0
    %279 = vmatpush1.bf16.msra.mxu0 %v259
    %280 = vmatprep.subr.bf16.mxu0 0
    %281 = vmatpush1.bf16.msra.mxu0 %v258
    %282 = vmatprep.subr.bf16.mxu0 0
    %283 = vmatpush2.bf16.msra.mxu0 0
    %284 = vmatprep.subr.bf16.mxu0 0
    %285 = vmatpush2.bf16.msra.mxu0 0
    %286 = vmatprep.subr.bf16.mxu0 0
    %287 = vmatpush2.bf16.msra.mxu0 0
    %288 = vmatprep.subr.bf16.mxu0 0
    %289 = vmatpush2.bf16.msra.mxu0 0
    %290 = vmatprep.subr.bf16.mxu0 0
    %291 = vmatpush2.bf16.msra.mxu0 0
    %292 = vmatprep.subr.bf16.mxu0 0
    %293 = vmatpush2.bf16.msra.mxu0 0
    %294 = vmatprep.subr.bf16.mxu0 0
    %295 = vmatpush2.bf16.msra.mxu0 0
    %296 = vmatprep.subr.bf16.mxu0 0
    %297 = vmatpush2.bf16.msra.mxu0 0
    %298 = vmatprep.mubr.bf16.mxu0 0
    %299 = vmatmul.mubr.bf16.gmra.mxu0 %v264
    %v300 = vpop.f32.mrf.mxu0
    %v301 = vadd.f32 %v248, %v300
    %v302 = vpop.f32.mrf.mxu0
    %v303 = vpop.f32.mrf.mxu0
    %v304 = vadd.f32 %v248, %v303
    %v305 = vpop.f32.mrf.mxu0
    %306 = vdwg.mxu0
    %v307 = vpack.c.bf16 %v304, %v301
    %v308 = vld [vmem:[%s5] sm:$0xf]
    %v309 = vld [vmem:[%s5 + $0x4] sm:$0xf]
    %v310 = vld [vmem:[%s5 + $0x8] sm:$0xf]
    %v311 = vld [vmem:[%s5 + $0xc] sm:$0xf]
    %v312 = vld [vmem:[%s8] sm:$0x1]
    %v314 = vlaneseq
    %v315 = vshrl.u32 %v314, 7
    %v316 = vsub.s32 0, %v315
    %v317 = vrot.slane %v312, %v316
    %v323 = vunpack.c.l.b16 %v308
    %v324 = vunpack.c.l.b16 %v309
    %v325 = vunpack.c.l.b16 %v310
    %v326 = vunpack.c.l.b16 %v311
    %v327 = vpack.c.b16 %v324, %v323
    %v328 = vpack.c.b16 %v326, %v325
    %v332 = vsel %vm262, %v223, 0
    %v335 = vsel %vm262, %v224, 0
    %v338 = vsel %vm262, %v225, 0
    %v341 = vsel %vm262, %v226, 0
    %v344 = vsel %vm262, %v227, 0
    %v347 = vsel %vm262, %v228, 0
    %v350 = vsel %vm262, %v229, 0
    %v353 = vsel %vm262, %v230, 0
    %v356 = vsel %vm262, %v231, 0
    %v359 = vsel %vm262, %v232, 0
    %v362 = vsel %vm262, %v233, 0
    %v365 = vsel %vm262, %v234, 0
    %v368 = vsel %vm262, %v235, 0
    %v371 = vsel %vm262, %v236, 0
    %v374 = vsel %vm262, %v237, 0
    %v377 = vsel %vm262, %v238, 0
    %379 = vmatprep.subr.bf16.mxu0 0
    %380 = vmatpush1.bf16.msra.mxu0 0
    %381 = vmatprep.subr.bf16.mxu0 0
    %382 = vmatpush1.bf16.msra.mxu0 0
    %383 = vmatprep.subr.bf16.mxu0 0
    %384 = vmatpush1.bf16.msra.mxu0 0
    %385 = vmatprep.subr.bf16.mxu0 0
    %386 = vmatpush1.bf16.msra.mxu0 0
    %387 = vmatprep.subr.bf16.mxu0 0
    %388 = vmatpush1.bf16.msra.mxu0 0
    %389 = vmatprep.subr.bf16.mxu0 0
    %390 = vmatpush1.bf16.msra.mxu0 0
    %391 = vmatprep.subr.bf16.mxu0 0
    %392 = vmatpush1.bf16.msra.mxu0 %v328
    %393 = vmatprep.subr.bf16.mxu0 0
    %394 = vmatpush1.bf16.msra.mxu0 %v327
    %395 = vmatprep.subr.bf16.mxu0 0
    %396 = vmatpush2.bf16.msra.mxu0 0
    %397 = vmatprep.subr.bf16.mxu0 0
    %398 = vmatpush2.bf16.msra.mxu0 0
    %399 = vmatprep.subr.bf16.mxu0 0
    %400 = vmatpush2.bf16.msra.mxu0 0
    %401 = vmatprep.subr.bf16.mxu0 0
    %402 = vmatpush2.bf16.msra.mxu0 0
    %403 = vmatprep.subr.bf16.mxu0 0
    %404 = vmatpush2.bf16.msra.mxu0 0
    %405 = vmatprep.subr.bf16.mxu0 0
    %406 = vmatpush2.bf16.msra.mxu0 0
    %407 = vmatprep.subr.bf16.mxu0 0
    %408 = vmatpush2.bf16.msra.mxu0 0
    %409 = vmatprep.subr.bf16.mxu0 0
    %410 = vmatpush2.bf16.msra.mxu0 0
    %411 = vmatprep.mubr.bf16.mxu0 0
    %412 = vmatmul.mubr.bf16.gmra.mxu0 %v332
    %v413 = vpop.f32.mrf.mxu0
    %v414 = vadd.f32 %v317, %v413
    %v415 = vpop.f32.mrf.mxu0
    %v416 = vpop.f32.mrf.mxu0
    %v417 = vadd.f32 %v317, %v416
    %v418 = vpop.f32.mrf.mxu0
    %419 = vmatprep.mubr.bf16.mxu0 0
    %420 = vmatmul.mubr.bf16.gmra.mxu0 %v335
    %v421 = vpop.f32.mrf.mxu0
    %v422 = vadd.f32 %v317, %v421
    %v423 = vpop.f32.mrf.mxu0
    %v424 = vpop.f32.mrf.mxu0
    %v425 = vadd.f32 %v317, %v424
    %v426 = vpop.f32.mrf.mxu0
    %427 = vmatprep.mubr.bf16.mxu0 0
    %428 = vmatmul.mubr.bf16.gmra.mxu0 %v338
    %v429 = vpop.f32.mrf.mxu0
    %v430 = vadd.f32 %v317, %v429
    %v431 = vpop.f32.mrf.mxu0
    %v432 = vpop.f32.mrf.mxu0
    %v433 = vadd.f32 %v317, %v432
    %v434 = vpop.f32.mrf.mxu0
    %435 = vmatprep.mubr.bf16.mxu0 0
    %436 = vmatmul.mubr.bf16.gmra.mxu0 %v341
    %v437 = vpop.f32.mrf.mxu0
    %v438 = vadd.f32 %v317, %v437
    %v439 = vpop.f32.mrf.mxu0
    %v440 = vpop.f32.mrf.mxu0
    %v441 = vadd.f32 %v317, %v440
    %v442 = vpop.f32.mrf.mxu0
    %443 = vmatprep.mubr.bf16.mxu0 0
    %444 = vmatmul.mubr.bf16.gmra.mxu0 %v344
    %v445 = vpop.f32.mrf.mxu0
    %v446 = vadd.f32 %v317, %v445
    %v447 = vpop.f32.mrf.mxu0
    %v448 = vpop.f32.mrf.mxu0
    %v449 = vadd.f32 %v317, %v448
    %v450 = vpop.f32.mrf.mxu0
    %451 = vmatprep.mubr.bf16.mxu0 0
    %452 = vmatmul.mubr.bf16.gmra.mxu0 %v347
    %v453 = vpop.f32.mrf.mxu0
    %v454 = vadd.f32 %v317, %v453
    %v455 = vpop.f32.mrf.mxu0
    %v456 = vpop.f32.mrf.mxu0
    %v457 = vadd.f32 %v317, %v456
    %v458 = vpop.f32.mrf.mxu0
    %459 = vmatprep.mubr.bf16.mxu0 0
    %460 = vmatmul.mubr.bf16.gmra.mxu0 %v350
    %v461 = vpop.f32.mrf.mxu0
    %v462 = vadd.f32 %v317, %v461
    %v463 = vpop.f32.mrf.mxu0
    %v464 = vpop.f32.mrf.mxu0
    %v465 = vadd.f32 %v317, %v464
    %v466 = vpop.f32.mrf.mxu0
    %467 = vmatprep.mubr.bf16.mxu0 0
    %468 = vmatmul.mubr.bf16.gmra.mxu0 %v353
    %v469 = vpop.f32.mrf.mxu0
    %v470 = vadd.f32 %v317, %v469
    %v471 = vpop.f32.mrf.mxu0
    %v472 = vpop.f32.mrf.mxu0
    %v473 = vadd.f32 %v317, %v472
    %v474 = vpop.f32.mrf.mxu0
    %475 = vmatprep.mubr.bf16.mxu0 0
    %476 = vmatmul.mubr.bf16.gmra.mxu0 %v356
    %v477 = vpop.f32.mrf.mxu0
    %v478 = vadd.f32 %v317, %v477
    %v479 = vpop.f32.mrf.mxu0
    %v480 = vpop.f32.mrf.mxu0
    %v481 = vadd.f32 %v317, %v480
    %v482 = vpop.f32.mrf.mxu0
    %483 = vmatprep.mubr.bf16.mxu0 0
    %484 = vmatmul.mubr.bf16.gmra.mxu0 %v359
    %v485 = vpop.f32.mrf.mxu0
    %v486 = vadd.f32 %v317, %v485
    %v487 = vpop.f32.mrf.mxu0
    %v488 = vpop.f32.mrf.mxu0
    %v489 = vadd.f32 %v317, %v488
    %v490 = vpop.f32.mrf.mxu0
    %491 = vmatprep.mubr.bf16.mxu0 0
    %492 = vmatmul.mubr.bf16.gmra.mxu0 %v362
    %v493 = vpop.f32.mrf.mxu0
    %v494 = vadd.f32 %v317, %v493
    %v495 = vpop.f32.mrf.mxu0
    %v496 = vpop.f32.mrf.mxu0
    %v497 = vadd.f32 %v317, %v496
    %v498 = vpop.f32.mrf.mxu0
    %499 = vmatprep.mubr.bf16.mxu0 0
    %500 = vmatmul.mubr.bf16.gmra.mxu0 %v365
    %v501 = vpop.f32.mrf.mxu0
    %v502 = vadd.f32 %v317, %v501
    %v503 = vpop.f32.mrf.mxu0
    %v504 = vpop.f32.mrf.mxu0
    %v505 = vadd.f32 %v317, %v504
    %v506 = vpop.f32.mrf.mxu0
    %507 = vmatprep.mubr.bf16.mxu0 0
    %508 = vmatmul.mubr.bf16.gmra.mxu0 %v368
    %v509 = vpop.f32.mrf.mxu0
    %v510 = vadd.f32 %v317, %v509
    %v511 = vpop.f32.mrf.mxu0
    %v512 = vpop.f32.mrf.mxu0
    %v513 = vadd.f32 %v317, %v512
    %v514 = vpop.f32.mrf.mxu0
    %515 = vmatprep.mubr.bf16.mxu0 0
    %516 = vmatmul.mubr.bf16.gmra.mxu0 %v371
    %v517 = vpop.f32.mrf.mxu0
    %v518 = vadd.f32 %v317, %v517
    %v519 = vpop.f32.mrf.mxu0
    %v520 = vpop.f32.mrf.mxu0
    %v521 = vadd.f32 %v317, %v520
    %v522 = vpop.f32.mrf.mxu0
    %523 = vmatprep.mubr.bf16.mxu0 0
    %524 = vmatmul.mubr.bf16.gmra.mxu0 %v374
    %v525 = vpop.f32.mrf.mxu0
    %v526 = vadd.f32 %v317, %v525
    %v527 = vpop.f32.mrf.mxu0
    %v528 = vpop.f32.mrf.mxu0
    %v529 = vadd.f32 %v317, %v528
    %v530 = vpop.f32.mrf.mxu0
    %531 = vmatprep.mubr.bf16.mxu0 0
    %532 = vmatmul.mubr.bf16.gmra.mxu0 %v377
    %v533 = vpop.f32.mrf.mxu0
    %v534 = vadd.f32 %v317, %v533
    %v535 = vpop.f32.mrf.mxu0
    %v536 = vpop.f32.mrf.mxu0
    %v537 = vadd.f32 %v317, %v536
    %v538 = vpop.f32.mrf.mxu0
    %539 = vdwg.mxu0
    %v540 = vpack.c.bf16 %v417, %v414
    %v541 = vpack.c.bf16 %v425, %v422
    %v542 = vpack.c.bf16 %v433, %v430
    %v543 = vpack.c.bf16 %v441, %v438
    %v544 = vpack.c.bf16 %v449, %v446
    %v545 = vpack.c.bf16 %v457, %v454
    %v546 = vpack.c.bf16 %v465, %v462
    %v547 = vpack.c.bf16 %v473, %v470
    %v548 = vpack.c.bf16 %v481, %v478
    %v549 = vpack.c.bf16 %v489, %v486
    %v550 = vpack.c.bf16 %v497, %v494
    %v551 = vpack.c.bf16 %v505, %v502
    %v552 = vpack.c.bf16 %v513, %v510
    %v553 = vpack.c.bf16 %v521, %v518
    %v554 = vpack.c.bf16 %v529, %v526
    %v555 = vpack.c.bf16 %v537, %v534
    %v556 = vld [vmem:[%s6] sm:$0xf]
    %v557 = vld [vmem:[%s6 + $0x4] sm:$0xf]
    %v558 = vld [vmem:[%s6 + $0x8] sm:$0xf]
    %v559 = vld [vmem:[%s6 + $0xc] sm:$0xf]
    %v560 = vld [vmem:[%s9] sm:$0x1]
    %v562 = vlaneseq
    %v563 = vshrl.u32 %v562, 7
    %v564 = vsub.s32 0, %v563
    %v565 = vrot.slane %v560, %v564
    %v599 = vunpack.c.l.b16 %v63
    %v600 = vunpack.c.l.b16 %v64
    %v601 = vunpack.c.l.b16 %v65
    %v602 = vunpack.c.l.b16 %v66
    %v603 = vunpack.c.l.b16 %v67
    %v604 = vunpack.c.l.b16 %v68
    %v605 = vunpack.c.l.b16 %v69
    %v606 = vunpack.c.l.b16 %v70
    %v607 = vunpack.c.l.b16 %v71
    %v608 = vunpack.c.l.b16 %v72
    %v609 = vunpack.c.l.b16 %v73
    %v610 = vunpack.c.l.b16 %v74
    %v611 = vunpack.c.l.b16 %v75
    %v612 = vunpack.c.l.b16 %v76
    %v613 = vunpack.c.l.b16 %v77
    %v614 = vunpack.c.l.b16 %v78
    %v615 = vunpack.c.l.b16 %v79
    %v616 = vunpack.c.l.b16 %v80
    %v617 = vunpack.c.l.b16 %v81
    %v618 = vunpack.c.l.b16 %v82
    %v619 = vunpack.c.l.b16 %v83
    %v620 = vunpack.c.l.b16 %v84
    %v621 = vunpack.c.l.b16 %v85
    %v622 = vunpack.c.l.b16 %v86
    %v623 = vunpack.c.l.b16 %v87
    %v624 = vunpack.c.l.b16 %v88
    %v625 = vunpack.c.l.b16 %v89
    %v626 = vunpack.c.l.b16 %v90
    %v627 = vunpack.c.l.b16 %v91
    %v628 = vunpack.c.l.b16 %v92
    %v629 = vunpack.c.l.b16 %v93
    %v630 = vunpack.c.l.b16 %v94
    %v631 = vpack.c.b16 %v600, %v599
    %v632 = vpack.c.b16 %v602, %v601
    %v633 = vpack.c.b16 %v604, %v603
    %v634 = vpack.c.b16 %v606, %v605
    %v635 = vpack.c.b16 %v608, %v607
    %v636 = vpack.c.b16 %v610, %v609
    %v637 = vpack.c.b16 %v612, %v611
    %v638 = vpack.c.b16 %v614, %v613
    %v639 = vpack.c.b16 %v616, %v615
    %v640 = vpack.c.b16 %v618, %v617
    %v641 = vpack.c.b16 %v620, %v619
    %v642 = vpack.c.b16 %v622, %v621
    %v643 = vpack.c.b16 %v624, %v623
    %v644 = vpack.c.b16 %v626, %v625
    %v645 = vpack.c.b16 %v628, %v627
    %v646 = vpack.c.b16 %v630, %v629
    %v651 = vunpack.c.l.b16 %v556
    %v652 = vunpack.c.l.b16 %v557
    %v653 = vunpack.c.l.b16 %v558
    %v654 = vunpack.c.l.b16 %v559
    %v655 = vpack.c.b16 %v652, %v651
    %v656 = vpack.c.b16 %v654, %v653
    %v660 = vsel %vm262, %v631, 0
    %v663 = vsel %vm262, %v632, 0
    %v666 = vsel %vm262, %v633, 0
    %v669 = vsel %vm262, %v634, 0
    %v672 = vsel %vm262, %v635, 0
    %v675 = vsel %vm262, %v636, 0
    %v678 = vsel %vm262, %v637, 0
    %v681 = vsel %vm262, %v638, 0
    %v684 = vsel %vm262, %v639, 0
    %v687 = vsel %vm262, %v640, 0
    %v690 = vsel %vm262, %v641, 0
    %v693 = vsel %vm262, %v642, 0
    %v696 = vsel %vm262, %v643, 0
    %v699 = vsel %vm262, %v644, 0
    %v702 = vsel %vm262, %v645, 0
    %v705 = vsel %vm262, %v646, 0
    %707 = vmatprep.subr.bf16.mxu0 0
    %708 = vmatpush1.bf16.msra.mxu0 0
    %709 = vmatprep.subr.bf16.mxu0 0
    %710 = vmatpush1.bf16.msra.mxu0 0
    %711 = vmatprep.subr.bf16.mxu0 0
    %712 = vmatpush1.bf16.msra.mxu0 0
    %713 = vmatprep.subr.bf16.mxu0 0
    %714 = vmatpush1.bf16.msra.mxu0 0
    %715 = vmatprep.subr.bf16.mxu0 0
    %716 = vmatpush1.bf16.msra.mxu0 0
    %717 = vmatprep.subr.bf16.mxu0 0
    %718 = vmatpush1.bf16.msra.mxu0 0
    %719 = vmatprep.subr.bf16.mxu0 0
    %720 = vmatpush1.bf16.msra.mxu0 %v656
    %721 = vmatprep.subr.bf16.mxu0 0
    %722 = vmatpush1.bf16.msra.mxu0 %v655
    %723 = vmatprep.subr.bf16.mxu0 0
    %724 = vmatpush2.bf16.msra.mxu0 0
    %725 = vmatprep.subr.bf16.mxu0 0
    %726 = vmatpush2.bf16.msra.mxu0 0
    %727 = vmatprep.subr.bf16.mxu0 0
    %728 = vmatpush2.bf16.msra.mxu0 0
    %729 = vmatprep.subr.bf16.mxu0 0
    %730 = vmatpush2.bf16.msra.mxu0 0
    %731 = vmatprep.subr.bf16.mxu0 0
    %732 = vmatpush2.bf16.msra.mxu0 0
    %733 = vmatprep.subr.bf16.mxu0 0
    %734 = vmatpush2.bf16.msra.mxu0 0
    %735 = vmatprep.subr.bf16.mxu0 0
    %736 = vmatpush2.bf16.msra.mxu0 0
    %737 = vmatprep.subr.bf16.mxu0 0
    %738 = vmatpush2.bf16.msra.mxu0 0
    %739 = vmatprep.mubr.bf16.mxu0 0
    %740 = vmatmul.mubr.bf16.gmra.mxu0 %v660
    %v741 = vpop.f32.mrf.mxu0
    %v742 = vadd.f32 %v565, %v741
    %v743 = vpop.f32.mrf.mxu0
    %v744 = vpop.f32.mrf.mxu0
    %v745 = vadd.f32 %v565, %v744
    %v746 = vpop.f32.mrf.mxu0
    %747 = vmatprep.mubr.bf16.mxu0 0
    %748 = vmatmul.mubr.bf16.gmra.mxu0 %v663
    %v749 = vpop.f32.mrf.mxu0
    %v750 = vadd.f32 %v565, %v749
    %v751 = vpop.f32.mrf.mxu0
    %v752 = vpop.f32.mrf.mxu0
    %v753 = vadd.f32 %v565, %v752
    %v754 = vpop.f32.mrf.mxu0
    %755 = vmatprep.mubr.bf16.mxu0 0
    %756 = vmatmul.mubr.bf16.gmra.mxu0 %v666
    %v757 = vpop.f32.mrf.mxu0
    %v758 = vadd.f32 %v565, %v757
    %v759 = vpop.f32.mrf.mxu0
    %v760 = vpop.f32.mrf.mxu0
    %v761 = vadd.f32 %v565, %v760
    %v762 = vpop.f32.mrf.mxu0
    %763 = vmatprep.mubr.bf16.mxu0 0
    %764 = vmatmul.mubr.bf16.gmra.mxu0 %v669
    %v765 = vpop.f32.mrf.mxu0
    %v766 = vadd.f32 %v565, %v765
    %v767 = vpop.f32.mrf.mxu0
    %v768 = vpop.f32.mrf.mxu0
    %v769 = vadd.f32 %v565, %v768
    %v770 = vpop.f32.mrf.mxu0
    %771 = vmatprep.mubr.bf16.mxu0 0
    %772 = vmatmul.mubr.bf16.gmra.mxu0 %v672
    %v773 = vpop.f32.mrf.mxu0
    %v774 = vadd.f32 %v565, %v773
    %v775 = vpop.f32.mrf.mxu0
    %v776 = vpop.f32.mrf.mxu0
    %v777 = vadd.f32 %v565, %v776
    %v778 = vpop.f32.mrf.mxu0
    %779 = vmatprep.mubr.bf16.mxu0 0
    %780 = vmatmul.mubr.bf16.gmra.mxu0 %v675
    %v781 = vpop.f32.mrf.mxu0
    %v782 = vadd.f32 %v565, %v781
    %v783 = vpop.f32.mrf.mxu0
    %v784 = vpop.f32.mrf.mxu0
    %v785 = vadd.f32 %v565, %v784
    %v786 = vpop.f32.mrf.mxu0
    %787 = vmatprep.mubr.bf16.mxu0 0
    %788 = vmatmul.mubr.bf16.gmra.mxu0 %v678
    %v789 = vpop.f32.mrf.mxu0
    %v790 = vadd.f32 %v565, %v789
    %v791 = vpop.f32.mrf.mxu0
    %v792 = vpop.f32.mrf.mxu0
    %v793 = vadd.f32 %v565, %v792
    %v794 = vpop.f32.mrf.mxu0
    %795 = vmatprep.mubr.bf16.mxu0 0
    %796 = vmatmul.mubr.bf16.gmra.mxu0 %v681
    %v797 = vpop.f32.mrf.mxu0
    %v798 = vadd.f32 %v565, %v797
    %v799 = vpop.f32.mrf.mxu0
    %v800 = vpop.f32.mrf.mxu0
    %v801 = vadd.f32 %v565, %v800
    %v802 = vpop.f32.mrf.mxu0
    %803 = vmatprep.mubr.bf16.mxu0 0
    %804 = vmatmul.mubr.bf16.gmra.mxu0 %v684
    %v805 = vpop.f32.mrf.mxu0
    %v806 = vadd.f32 %v565, %v805
    %v807 = vpop.f32.mrf.mxu0
    %v808 = vpop.f32.mrf.mxu0
    %v809 = vadd.f32 %v565, %v808
    %v810 = vpop.f32.mrf.mxu0
    %811 = vmatprep.mubr.bf16.mxu0 0
    %812 = vmatmul.mubr.bf16.gmra.mxu0 %v687
    %v813 = vpop.f32.mrf.mxu0
    %v814 = vadd.f32 %v565, %v813
    %v815 = vpop.f32.mrf.mxu0
    %v816 = vpop.f32.mrf.mxu0
    %v817 = vadd.f32 %v565, %v816
    %v818 = vpop.f32.mrf.mxu0
    %819 = vmatprep.mubr.bf16.mxu0 0
    %820 = vmatmul.mubr.bf16.gmra.mxu0 %v690
    %v821 = vpop.f32.mrf.mxu0
    %v822 = vadd.f32 %v565, %v821
    %v823 = vpop.f32.mrf.mxu0
    %v824 = vpop.f32.mrf.mxu0
    %v825 = vadd.f32 %v565, %v824
    %v826 = vpop.f32.mrf.mxu0
    %827 = vmatprep.mubr.bf16.mxu0 0
    %828 = vmatmul.mubr.bf16.gmra.mxu0 %v693
    %v829 = vpop.f32.mrf.mxu0
    %v830 = vadd.f32 %v565, %v829
    %v831 = vpop.f32.mrf.mxu0
    %v832 = vpop.f32.mrf.mxu0
    %v833 = vadd.f32 %v565, %v832
    %v834 = vpop.f32.mrf.mxu0
    %835 = vmatprep.mubr.bf16.mxu0 0
    %836 = vmatmul.mubr.bf16.gmra.mxu0 %v696
    %v837 = vpop.f32.mrf.mxu0
    %v838 = vadd.f32 %v565, %v837
    %v839 = vpop.f32.mrf.mxu0
    %v840 = vpop.f32.mrf.mxu0
    %v841 = vadd.f32 %v565, %v840
    %v842 = vpop.f32.mrf.mxu0
    %843 = vmatprep.mubr.bf16.mxu0 0
    %844 = vmatmul.mubr.bf16.gmra.mxu0 %v699
    %v845 = vpop.f32.mrf.mxu0
    %v846 = vadd.f32 %v565, %v845
    %v847 = vpop.f32.mrf.mxu0
    %v848 = vpop.f32.mrf.mxu0
    %v849 = vadd.f32 %v565, %v848
    %v850 = vpop.f32.mrf.mxu0
    %851 = vmatprep.mubr.bf16.mxu0 0
    %852 = vmatmul.mubr.bf16.gmra.mxu0 %v702
    %v853 = vpop.f32.mrf.mxu0
    %v854 = vadd.f32 %v565, %v853
    %v855 = vpop.f32.mrf.mxu0
    %v856 = vpop.f32.mrf.mxu0
    %v857 = vadd.f32 %v565, %v856
    %v858 = vpop.f32.mrf.mxu0
    %859 = vmatprep.mubr.bf16.mxu0 0
    %860 = vmatmul.mubr.bf16.gmra.mxu0 %v705
    %v861 = vpop.f32.mrf.mxu0
    %v862 = vadd.f32 %v565, %v861
    %v863 = vpop.f32.mrf.mxu0
    %v864 = vpop.f32.mrf.mxu0
    %v865 = vadd.f32 %v565, %v864
    %v866 = vpop.f32.mrf.mxu0
    %867 = vdwg.mxu0
    %v868 = vpack.c.bf16 %v745, %v742
    %v869 = vpack.c.bf16 %v753, %v750
    %v870 = vpack.c.bf16 %v761, %v758
    %v871 = vpack.c.bf16 %v769, %v766
    %v872 = vpack.c.bf16 %v777, %v774
    %v873 = vpack.c.bf16 %v785, %v782
    %v874 = vpack.c.bf16 %v793, %v790
    %v875 = vpack.c.bf16 %v801, %v798
    %v876 = vpack.c.bf16 %v809, %v806
    %v877 = vpack.c.bf16 %v817, %v814
    %v878 = vpack.c.bf16 %v825, %v822
    %v879 = vpack.c.bf16 %v833, %v830
    %v880 = vpack.c.bf16 %v841, %v838
    %v881 = vpack.c.bf16 %v849, %v846
    %v882 = vpack.c.bf16 %v857, %v854
    %v883 = vpack.c.bf16 %v865, %v862
    %v885 = vunpack.c.l.b16 %v307
    %v886 = vunpack.c.h.b16 %v307
    %v887 = vpack.c.b16 %v885, %v885
    %v888 = vpack.c.b16 %v886, %v886
    %v889 = vlaneseq
    %v890 = vand.u32 %v889, 127
    %vm891 = vcmp.lt.s32.totalorder %v890, 16
    %v892 = vsel %vm891, 0.0, -1e+30
    %vm893 = vcmask 64512
    %v895 = vsel %vm893, %v887, 0
    %v898 = vsel %vm893, %v540, 0
    %v901 = vsel %vm893, %v541, 0
    %v904 = vsel %vm893, %v542, 0
    %v907 = vsel %vm893, %v543, 0
    %v910 = vsel %vm893, %v544, 0
    %v913 = vsel %vm893, %v545, 0
    %v916 = vsel %vm893, %v546, 0
    %v919 = vsel %vm893, %v547, 0
    %921 = vmatprep.subr.bf16.mxu0 0
    %922 = vmatpush1.bf16.xpose.msra.mxu0 %v919
    %923 = vmatprep.subr.bf16.mxu0 0
    %924 = vmatpush1.bf16.xpose.msra.mxu0 %v916
    %925 = vmatprep.subr.bf16.mxu0 0
    %926 = vmatpush1.bf16.xpose.msra.mxu0 %v913
    %927 = vmatprep.subr.bf16.mxu0 0
    %928 = vmatpush1.bf16.xpose.msra.mxu0 %v910
    %929 = vmatprep.subr.bf16.mxu0 0
    %930 = vmatpush1.bf16.xpose.msra.mxu0 %v907
    %931 = vmatprep.subr.bf16.mxu0 0
    %932 = vmatpush1.bf16.xpose.msra.mxu0 %v904
    %933 = vmatprep.subr.bf16.mxu0 0
    %934 = vmatpush1.bf16.xpose.msra.mxu0 %v901
    %935 = vmatprep.subr.bf16.mxu0 0
    %936 = vmatpush1.bf16.xpose.msra.mxu0 %v898
    %937 = vmatprep.subr.bf16.mxu0 0
    %938 = vmatpush2.bf16.xpose.msra.mxu0 0
    %939 = vmatprep.subr.bf16.mxu0 0
    %940 = vmatpush2.bf16.xpose.msra.mxu0 0
    %941 = vmatprep.subr.bf16.mxu0 0
    %942 = vmatpush2.bf16.xpose.msra.mxu0 0
    %943 = vmatprep.subr.bf16.mxu0 0
    %944 = vmatpush2.bf16.xpose.msra.mxu0 0
    %945 = vmatprep.subr.bf16.mxu0 0
    %946 = vmatpush2.bf16.xpose.msra.mxu0 0
    %947 = vmatprep.subr.bf16.mxu0 0
    %948 = vmatpush2.bf16.xpose.msra.mxu0 0
    %949 = vmatprep.subr.bf16.mxu0 0
    %950 = vmatpush2.bf16.xpose.msra.mxu0 0
    %951 = vmatprep.subr.bf16.mxu0 0
    %952 = vmatpush2.bf16.xpose.msra.mxu0 0
    %953 = vmatprep.mubr.bf16.mxu0 0
    %954 = vmatmul.mubr.bf16.gmra.mxu0 %v895
    %v955 = vpop.f32.mrf.mxu0
    %v956 = vadd.f32 %v892, %v955
    %v957 = vpop.f32.mrf.mxu0
    %v958 = vpop.f32.mrf.mxu0
    %v959 = vpop.f32.mrf.mxu0
    %960 = vdwg.mxu0
    %v962 = vsel %vm893, %v888, 0
    %v965 = vsel %vm893, %v548, 0
    %v968 = vsel %vm893, %v549, 0
    %v971 = vsel %vm893, %v550, 0
    %v974 = vsel %vm893, %v551, 0
    %v977 = vsel %vm893, %v552, 0
    %v980 = vsel %vm893, %v553, 0
    %v983 = vsel %vm893, %v554, 0
    %v986 = vsel %vm893, %v555, 0
    %988 = vmatprep.subr.bf16.mxu0 0
    %989 = vmatpush1.bf16.xpose.msra.mxu0 %v986
    %990 = vmatprep.subr.bf16.mxu0 0
    %991 = vmatpush1.bf16.xpose.msra.mxu0 %v983
    %992 = vmatprep.subr.bf16.mxu0 0
    %993 = vmatpush1.bf16.xpose.msra.mxu0 %v980
    %994 = vmatprep.subr.bf16.mxu0 0
    %995 = vmatpush1.bf16.xpose.msra.mxu0 %v977
    %996 = vmatprep.subr.bf16.mxu0 0
    %997 = vmatpush1.bf16.xpose.msra.mxu0 %v974
    %998 = vmatprep.subr.bf16.mxu0 0
    %999 = vmatpush1.bf16.xpose.msra.mxu0 %v971
    %1000 = vmatprep.subr.bf16.mxu0 0
    %1001 = vmatpush1.bf16.xpose.msra.mxu0 %v968
    %1002 = vmatprep.subr.bf16.mxu0 0
    %1003 = vmatpush1.bf16.xpose.msra.mxu0 %v965
    %1004 = vmatprep.subr.bf16.mxu0 0
    %1005 = vmatpush2.bf16.xpose.msra.mxu0 0
    %1006 = vmatprep.subr.bf16.mxu0 0
    %1007 = vmatpush2.bf16.xpose.msra.mxu0 0
    %1008 = vmatprep.subr.bf16.mxu0 0
    %1009 = vmatpush2.bf16.xpose.msra.mxu0 0
    %1010 = vmatprep.subr.bf16.mxu0 0
    %1011 = vmatpush2.bf16.xpose.msra.mxu0 0
    %1012 = vmatprep.subr.bf16.mxu0 0
    %1013 = vmatpush2.bf16.xpose.msra.mxu0 0
    %1014 = vmatprep.subr.bf16.mxu0 0
    %1015 = vmatpush2.bf16.xpose.msra.mxu0 0
    %1016 = vmatprep.subr.bf16.mxu0 0
    %1017 = vmatpush2.bf16.xpose.msra.mxu0 0
    %1018 = vmatprep.subr.bf16.mxu0 0
    %1019 = vmatpush2.bf16.xpose.msra.mxu0 0
    %1020 = vmatprep.mubr.bf16.mxu0 0
    %1021 = vmatmul.mubr.bf16.gmra.mxu0 %v962
    %v1022 = vpop.f32.mrf.mxu0
    %v1023 = vadd.f32 %v892, %v1022
    %v1024 = vpop.f32.mrf.mxu0
    %v1025 = vpop.f32.mrf.mxu0
    %v1026 = vpop.f32.mrf.mxu0
    %1027 = vdwg.mxu0
    %1028 = vmax.xlane.f32.xlu0 %v956
    %v1029 = vpop.xlane.xlu0 %1028
    %1030 = vmax.xlane.f32.xlu0 %v1023
    %v1031 = vpop.xlane.xlu0 %1030
    %v1032 = vsub.f32 %v956, %v1029
    %v1033 = vsub.f32 %v1023, %v1031
    %v1034 = vmul.f32 %v1032, 1.442695
    %v1035 = vpow.pop %v1034
    %v1036 = vmul.f32 %v1033, 1.442695
    %v1037 = vpow.pop %v1036
    %1038 = vadd.xlane.f32.xlu0 %v1035
    %v1039 = vpop.xlane.xlu0 %1038
    %1040 = vadd.xlane.f32.xlu0 %v1037
    %v1041 = vpop.xlane.xlu0 %1040
    %v1042 = vrcp.pop %v1039
    %v1043 = vrcp.pop %v1041
    %v1044 = vmul.f32 %v1035, %v1042
    %v1045 = vmul.f32 %v1037, %v1043
    %v1046 = vpack.c.bf16 %v1044, %v1044
    %v1047 = vpack.c.bf16 %v1045, %v1045
    %1048 = vmatprep.subr.bf16.mxu0 0
    %1049 = vmatpush1.bf16.msra.mxu0 %v875
    %1050 = vmatprep.subr.bf16.mxu0 0
    %1051 = vmatpush1.bf16.msra.mxu0 %v874
    %1052 = vmatprep.subr.bf16.mxu0 0
    %1053 = vmatpush1.bf16.msra.mxu0 %v873
    %1054 = vmatprep.subr.bf16.mxu0 0
    %1055 = vmatpush1.bf16.msra.mxu0 %v872
    %1056 = vmatprep.subr.bf16.mxu0 0
    %1057 = vmatpush1.bf16.msra.mxu0 %v871
    %1058 = vmatprep.subr.bf16.mxu0 0
    %1059 = vmatpush1.bf16.msra.mxu0 %v870
    %1060 = vmatprep.subr.bf16.mxu0 0
    %1061 = vmatpush1.bf16.msra.mxu0 %v869
    %1062 = vmatprep.subr.bf16.mxu0 0
    %1063 = vmatpush1.bf16.msra.mxu0 %v868
    %1064 = vmatprep.subr.bf16.mxu0 0
    %1065 = vmatpush2.bf16.msra.mxu0 0
    %1066 = vmatprep.subr.bf16.mxu0 0
    %1067 = vmatpush2.bf16.msra.mxu0 0
    %1068 = vmatprep.subr.bf16.mxu0 0
    %1069 = vmatpush2.bf16.msra.mxu0 0
    %1070 = vmatprep.subr.bf16.mxu0 0
    %1071 = vmatpush2.bf16.msra.mxu0 0
    %1072 = vmatprep.subr.bf16.mxu0 0
    %1073 = vmatpush2.bf16.msra.mxu0 0
    %1074 = vmatprep.subr.bf16.mxu0 0
    %1075 = vmatpush2.bf16.msra.mxu0 0
    %1076 = vmatprep.subr.bf16.mxu0 0
    %1077 = vmatpush2.bf16.msra.mxu0 0
    %1078 = vmatprep.subr.bf16.mxu0 0
    %1079 = vmatpush2.bf16.msra.mxu0 0
    %1080 = vmatprep.mubr.bf16.mxu0 0
    %1081 = vmatmul.mubr.bf16.gmra.mxu0 %v1046
    %v1082 = vpop.f32.mrf.mxu0
    %v1083 = vadd.f32 0.0, %v1082
    %v1084 = vpop.f32.mrf.mxu0
    %v1085 = vpop.f32.mrf.mxu0
    %v1086 = vpop.f32.mrf.mxu0
    %1087 = vdwg.mxu0
    %1088 = vmatprep.subr.bf16.mxu0 0
    %1089 = vmatpush1.bf16.msra.mxu0 %v883
    %1090 = vmatprep.subr.bf16.mxu0 0
    %1091 = vmatpush1.bf16.msra.mxu0 %v882
    %1092 = vmatprep.subr.bf16.mxu0 0
    %1093 = vmatpush1.bf16.msra.mxu0 %v881
    %1094 = vmatprep.subr.bf16.mxu0 0
    %1095 = vmatpush1.bf16.msra.mxu0 %v880
    %1096 = vmatprep.subr.bf16.mxu0 0
    %1097 = vmatpush1.bf16.msra.mxu0 %v879
    %1098 = vmatprep.subr.bf16.mxu0 0
    %1099 = vmatpush1.bf16.msra.mxu0 %v878
    %1100 = vmatprep.subr.bf16.mxu0 0
    %1101 = vmatpush1.bf16.msra.mxu0 %v877
    %1102 = vmatprep.subr.bf16.mxu0 0
    %1103 = vmatpush1.bf16.msra.mxu0 %v876
    %1104 = vmatprep.subr.bf16.mxu0 0
    %1105 = vmatpush2.bf16.msra.mxu0 0
    %1106 = vmatprep.subr.bf16.mxu0 0
    %1107 = vmatpush2.bf16.msra.mxu0 0
    %1108 = vmatprep.subr.bf16.mxu0 0
    %1109 = vmatpush2.bf16.msra.mxu0 0
    %1110 = vmatprep.subr.bf16.mxu0 0
    %1111 = vmatpush2.bf16.msra.mxu0 0
    %1112 = vmatprep.subr.bf16.mxu0 0
    %1113 = vmatpush2.bf16.msra.mxu0 0
    %1114 = vmatprep.subr.bf16.mxu0 0
    %1115 = vmatpush2.bf16.msra.mxu0 0
    %1116 = vmatprep.subr.bf16.mxu0 0
    %1117 = vmatpush2.bf16.msra.mxu0 0
    %1118 = vmatprep.subr.bf16.mxu0 0
    %1119 = vmatpush2.bf16.msra.mxu0 0
    %1120 = vmatprep.mubr.bf16.mxu0 0
    %1121 = vmatmul.mubr.bf16.gmra.mxu0 %v1047
    %v1122 = vpop.f32.mrf.mxu0
    %v1123 = vadd.f32 0.0, %v1122
    %v1124 = vpop.f32.mrf.mxu0
    %v1125 = vpop.f32.mrf.mxu0
    %v1126 = vpop.f32.mrf.mxu0
    %1127 = vdwg.mxu0
    %v1128 = vpack.c.bf16 %v1123, %v1083
    %v1130 = vunpack.c.l.b16 %v1128
    %v1131 = vunpack.c.h.b16 %v1128
    %v1132 = vpack.c.b16 %v1130, %v1130
    %v1133 = vpack.c.b16 %v1131, %v1131
    %vm1136 = vcmask 60416
    %1137 = vst.msk [vmem:[#allocation2] sm:$0xf] %vm1136, %v1132
    %1138 = vst.msk [vmem:[#allocation2 + $0x4] sm:$0xf] %vm1136, %v1133
    %1139 = vst [vmem:[#allocation5] sm:$0xff] %v1044
    %1140 = vst [vmem:[#allocation5 + $0x8] sm:$0xff] %v1045
    %1141 = vrot.lane.b32.xlu0 %v887, 120
    %v1142 = vpop.permute.xlu0 %1141
    %1151 = vrot.lane.b32.xlu0 %v540, 120
    %v1152 = vpop.permute.xlu0 %1151
    %1153 = vrot.lane.b32.xlu0 %v541, 120
    %v1154 = vpop.permute.xlu0 %1153
    %1155 = vrot.lane.b32.xlu0 %v542, 120
    %v1156 = vpop.permute.xlu0 %1155
    %1157 = vrot.lane.b32.xlu0 %v543, 120
    %v1158 = vpop.permute.xlu0 %1157
    %1159 = vrot.lane.b32.xlu0 %v544, 120
    %v1160 = vpop.permute.xlu0 %1159
    %1161 = vrot.lane.b32.xlu0 %v545, 120
    %v1162 = vpop.permute.xlu0 %1161
    %1163 = vrot.lane.b32.xlu0 %v546, 120
    %v1164 = vpop.permute.xlu0 %1163
    %1165 = vrot.lane.b32.xlu0 %v547, 120
    %v1166 = vpop.permute.xlu0 %1165
    %v1168 = vsel %vm893, %v1142, 0
    %v1171 = vsel %vm893, %v1152, 0
    %v1174 = vsel %vm893, %v1154, 0
    %v1177 = vsel %vm893, %v1156, 0
    %v1180 = vsel %vm893, %v1158, 0
    %v1183 = vsel %vm893, %v1160, 0
    %v1186 = vsel %vm893, %v1162, 0
    %v1189 = vsel %vm893, %v1164, 0
    %v1192 = vsel %vm893, %v1166, 0
    %1194 = vmatprep.subr.bf16.mxu0 0
    %1195 = vmatpush1.bf16.xpose.msra.mxu0 %v1192
    %1196 = vmatprep.subr.bf16.mxu0 0
    %1197 = vmatpush1.bf16.xpose.msra.mxu0 %v1189
    %1198 = vmatprep.subr.bf16.mxu0 0
    %1199 = vmatpush1.bf16.xpose.msra.mxu0 %v1186
    %1200 = vmatprep.subr.bf16.mxu0 0
    %1201 = vmatpush1.bf16.xpose.msra.mxu0 %v1183
    %1202 = vmatprep.subr.bf16.mxu0 0
    %1203 = vmatpush1.bf16.xpose.msra.mxu0 %v1180
    %1204 = vmatprep.subr.bf16.mxu0 0
    %1205 = vmatpush1.bf16.xpose.msra.mxu0 %v1177
    %1206 = vmatprep.subr.bf16.mxu0 0
    %1207 = vmatpush1.bf16.xpose.msra.mxu0 %v1174
    %1208 = vmatprep.subr.bf16.mxu0 0
    %1209 = vmatpush1.bf16.xpose.msra.mxu0 %v1171
    %1210 = vmatprep.subr.bf16.mxu0 0
    %1211 = vmatpush2.bf16.xpose.msra.mxu0 0
    %1212 = vmatprep.subr.bf16.mxu0 0
    %1213 = vmatpush2.bf16.xpose.msra.mxu0 0
    %1214 = vmatprep.subr.bf16.mxu0 0
    %1215 = vmatpush2.bf16.xpose.msra.mxu0 0
    %1216 = vmatprep.subr.bf16.mxu0 0
    %1217 = vmatpush2.bf16.xpose.msra.mxu0 0
    %1218 = vmatprep.subr.bf16.mxu0 0
    %1219 = vmatpush2.bf16.xpose.msra.mxu0 0
    %1220 = vmatprep.subr.bf16.mxu0 0
    %1221 = vmatpush2.bf16.xpose.msra.mxu0 0
    %1222 = vmatprep.subr.bf16.mxu0 0
    %1223 = vmatpush2.bf16.xpose.msra.mxu0 0
    %1224 = vmatprep.subr.bf16.mxu0 0
    %1225 = vmatpush2.bf16.xpose.msra.mxu0 0
    %1226 = vmatprep.mubr.bf16.mxu0 0
    %1227 = vmatmul.mubr.bf16.gmra.mxu0 %v1168
    %v1228 = vpop.f32.mrf.mxu0
    %v1229 = vadd.f32 %v892, %v1228
    %v1230 = vpop.f32.mrf.mxu0
    %v1231 = vpop.f32.mrf.mxu0
    %v1232 = vpop.f32.mrf.mxu0
    %1233 = vdwg.mxu0
    %1234 = vrot.lane.b32.xlu0 %v888, 120
    %v1235 = vpop.permute.xlu0 %1234
    %1244 = vrot.lane.b32.xlu0 %v548, 120
    %v1245 = vpop.permute.xlu0 %1244
    %1246 = vrot.lane.b32.xlu0 %v549, 120
    %v1247 = vpop.permute.xlu0 %1246
    %1248 = vrot.lane.b32.xlu0 %v550, 120
    %v1249 = vpop.permute.xlu0 %1248
    %1250 = vrot.lane.b32.xlu0 %v551, 120
    %v1251 = vpop.permute.xlu0 %1250
    %1252 = vrot.lane.b32.xlu0 %v552, 120
    %v1253 = vpop.permute.xlu0 %1252
    %1254 = vrot.lane.b32.xlu0 %v553, 120
    %v1255 = vpop.permute.xlu0 %1254
    %1256 = vrot.lane.b32.xlu0 %v554, 120
    %v1257 = vpop.permute.xlu0 %1256
    %1258 = vrot.lane.b32.xlu0 %v555, 120
    %v1259 = vpop.permute.xlu0 %1258
    %v1261 = vsel %vm893, %v1235, 0
    %v1264 = vsel %vm893, %v1245, 0
    %v1267 = vsel %vm893, %v1247, 0
    %v1270 = vsel %vm893, %v1249, 0
    %v1273 = vsel %vm893, %v1251, 0
    %v1276 = vsel %vm893, %v1253, 0
    %v1279 = vsel %vm893, %v1255, 0
    %v1282 = vsel %vm893, %v1257, 0
    %v1285 = vsel %vm893, %v1259, 0
    %1287 = vmatprep.subr.bf16.mxu0 0
    %1288 = vmatpush1.bf16.xpose.msra.mxu0 %v1285
    %1289 = vmatprep.subr.bf16.mxu0 0
    %1290 = vmatpush1.bf16.xpose.msra.mxu0 %v1282
    %1291 = vmatprep.subr.bf16.mxu0 0
    %1292 = vmatpush1.bf16.xpose.msra.mxu0 %v1279
    %1293 = vmatprep.subr.bf16.mxu0 0
    %1294 = vmatpush1.bf16.xpose.msra.mxu0 %v1276
    %1295 = vmatprep.subr.bf16.mxu0 0
    %1296 = vmatpush1.bf16.xpose.msra.mxu0 %v1273
    %1297 = vmatprep.subr.bf16.mxu0 0
    %1298 = vmatpush1.bf16.xpose.msra.mxu0 %v1270
    %1299 = vmatprep.subr.bf16.mxu0 0
    %1300 = vmatpush1.bf16.xpose.msra.mxu0 %v1267
    %1301 = vmatprep.subr.bf16.mxu0 0
    %1302 = vmatpush1.bf16.xpose.msra.mxu0 %v1264
    %1303 = vmatprep.subr.bf16.mxu0 0
    %1304 = vmatpush2.bf16.xpose.msra.mxu0 0
    %1305 = vmatprep.subr.bf16.mxu0 0
    %1306 = vmatpush2.bf16.xpose.msra.mxu0 0
    %1307 = vmatprep.subr.bf16.mxu0 0
    %1308 = vmatpush2.bf16.xpose.msra.mxu0 0
    %1309 = vmatprep.subr.bf16.mxu0 0
    %1310 = vmatpush2.bf16.xpose.msra.mxu0 0
    %1311 = vmatprep.subr.bf16.mxu0 0
    %1312 = vmatpush2.bf16.xpose.msra.mxu0 0
    %1313 = vmatprep.subr.bf16.mxu0 0
    %1314 = vmatpush2.bf16.xpose.msra.mxu0 0
    %1315 = vmatprep.subr.bf16.mxu0 0
    %1316 = vmatpush2.bf16.xpose.msra.mxu0 0
    %1317 = vmatprep.subr.bf16.mxu0 0
    %1318 = vmatpush2.bf16.xpose.msra.mxu0 0
    %1319 = vmatprep.mubr.bf16.mxu0 0
    %1320 = vmatmul.mubr.bf16.gmra.mxu0 %v1261
    %v1321 = vpop.f32.mrf.mxu0
    %v1322 = vadd.f32 %v892, %v1321
    %v1323 = vpop.f32.mrf.mxu0
    %v1324 = vpop.f32.mrf.mxu0
    %v1325 = vpop.f32.mrf.mxu0
    %1326 = vdwg.mxu0
    %1327 = vmax.xlane.f32.xlu0 %v1229
    %v1328 = vpop.xlane.xlu0 %1327
    %1329 = vmax.xlane.f32.xlu0 %v1322
    %v1330 = vpop.xlane.xlu0 %1329
    %v1331 = vsub.f32 %v1229, %v1328
    %v1332 = vsub.f32 %v1322, %v1330
    %v1333 = vmul.f32 %v1331, 1.442695
    %v1334 = vpow.pop %v1333
    %v1335 = vmul.f32 %v1332, 1.442695
    %v1336 = vpow.pop %v1335
    %1337 = vadd.xlane.f32.xlu0 %v1334
    %v1338 = vpop.xlane.xlu0 %1337
    %1339 = vadd.xlane.f32.xlu0 %v1336
    %v1340 = vpop.xlane.xlu0 %1339
    %v1341 = vrcp.pop %v1338
    %v1342 = vrcp.pop %v1340
    %v1343 = vmul.f32 %v1334, %v1341
    %v1344 = vmul.f32 %v1336, %v1342
    %v1345 = vpack.c.bf16 %v1343, %v1343
    %v1346 = vpack.c.bf16 %v1344, %v1344
    %1355 = vrot.lane.b32.xlu0 %v868, 120
    %v1356 = vpop.permute.xlu0 %1355
    %1357 = vrot.lane.b32.xlu0 %v869, 120
    %v1358 = vpop.permute.xlu0 %1357
    %1359 = vrot.lane.b32.xlu0 %v870, 120
    %v1360 = vpop.permute.xlu0 %1359
    %1361 = vrot.lane.b32.xlu0 %v871, 120
    %v1362 = vpop.permute.xlu0 %1361
    %1363 = vrot.lane.b32.xlu0 %v872, 120
    %v1364 = vpop.permute.xlu0 %1363
    %1365 = vrot.lane.b32.xlu0 %v873, 120
    %v1366 = vpop.permute.xlu0 %1365
    %1367 = vrot.lane.b32.xlu0 %v874, 120
    %v1368 = vpop.permute.xlu0 %1367
    %1369 = vrot.lane.b32.xlu0 %v875, 120
    %v1370 = vpop.permute.xlu0 %1369
    %1379 = vmatprep.subr.bf16.mxu0 0
    %1380 = vmatpush1.bf16.msra.mxu0 %v1370
    %1381 = vmatprep.subr.bf16.mxu0 0
    %1382 = vmatpush1.bf16.msra.mxu0 %v1368
    %1383 = vmatprep.subr.bf16.mxu0 0
    %1384 = vmatpush1.bf16.msra.mxu0 %v1366
    %1385 = vmatprep.subr.bf16.mxu0 0
    %1386 = vmatpush1.bf16.msra.mxu0 %v1364
    %1387 = vmatprep.subr.bf16.mxu0 0
    %1388 = vmatpush1.bf16.msra.mxu0 %v1362
    %1389 = vmatprep.subr.bf16.mxu0 0
    %1390 = vmatpush1.bf16.msra.mxu0 %v1360
    %1391 = vmatprep.subr.bf16.mxu0 0
    %1392 = vmatpush1.bf16.msra.mxu0 %v1358
    %1393 = vmatprep.subr.bf16.mxu0 0
    %1394 = vmatpush1.bf16.msra.mxu0 %v1356
    %1395 = vmatprep.subr.bf16.mxu0 0
    %1396 = vmatpush2.bf16.msra.mxu0 0
    %1397 = vmatprep.subr.bf16.mxu0 0
    %1398 = vmatpush2.bf16.msra.mxu0 0
    %1399 = vmatprep.subr.bf16.mxu0 0
    %1400 = vmatpush2.bf16.msra.mxu0 0
    %1401 = vmatprep.subr.bf16.mxu0 0
    %1402 = vmatpush2.bf16.msra.mxu0 0
    %1403 = vmatprep.subr.bf16.mxu0 0
    %1404 = vmatpush2.bf16.msra.mxu0 0
    %1405 = vmatprep.subr.bf16.mxu0 0
    %1406 = vmatpush2.bf16.msra.mxu0 0
    %1407 = vmatprep.subr.bf16.mxu0 0
    %1408 = vmatpush2.bf16.msra.mxu0 0
    %1409 = vmatprep.subr.bf16.mxu0 0
    %1410 = vmatpush2.bf16.msra.mxu0 0
    %1411 = vmatprep.mubr.bf16.mxu0 0
    %1412 = vmatmul.mubr.bf16.gmra.mxu0 %v1345
    %v1413 = vpop.f32.mrf.mxu0
    %v1414 = vadd.f32 0.0, %v1413
    %v1415 = vpop.f32.mrf.mxu0
    %v1416 = vpop.f32.mrf.mxu0
    %v1417 = vpop.f32.mrf.mxu0
    %1418 = vdwg.mxu0
    %1427 = vrot.lane.b32.xlu0 %v876, 120
    %v1428 = vpop.permute.xlu0 %1427
    %1429 = vrot.lane.b32.xlu0 %v877, 120
    %v1430 = vpop.permute.xlu0 %1429
    %1431 = vrot.lane.b32.xlu0 %v878, 120
    %v1432 = vpop.permute.xlu0 %1431
    %1433 = vrot.lane.b32.xlu0 %v879, 120
    %v1434 = vpop.permute.xlu0 %1433
    %1435 = vrot.lane.b32.xlu0 %v880, 120
    %v1436 = vpop.permute.xlu0 %1435
    %1437 = vrot.lane.b32.xlu0 %v881, 120
    %v1438 = vpop.permute.xlu0 %1437
    %1439 = vrot.lane.b32.xlu0 %v882, 120
    %v1440 = vpop.permute.xlu0 %1439
    %1441 = vrot.lane.b32.xlu0 %v883, 120
    %v1442 = vpop.permute.xlu0 %1441
    %1451 = vmatprep.subr.bf16.mxu0 0
    %1452 = vmatpush1.bf16.msra.mxu0 %v1442
    %1453 = vmatprep.subr.bf16.mxu0 0
    %1454 = vmatpush1.bf16.msra.mxu0 %v1440
    %1455 = vmatprep.subr.bf16.mxu0 0
    %1456 = vmatpush1.bf16.msra.mxu0 %v1438
    %1457 = vmatprep.subr.bf16.mxu0 0
    %1458 = vmatpush1.bf16.msra.mxu0 %v1436
    %1459 = vmatprep.subr.bf16.mxu0 0
    %1460 = vmatpush1.bf16.msra.mxu0 %v1434
    %1461 = vmatprep.subr.bf16.mxu0 0
    %1462 = vmatpush1.bf16.msra.mxu0 %v1432
    %1463 = vmatprep.subr.bf16.mxu0 0
    %1464 = vmatpush1.bf16.msra.mxu0 %v1430
    %1465 = vmatprep.subr.bf16.mxu0 0
    %1466 = vmatpush1.bf16.msra.mxu0 %v1428
    %1467 = vmatprep.subr.bf16.mxu0 0
    %1468 = vmatpush2.bf16.msra.mxu0 0
    %1469 = vmatprep.subr.bf16.mxu0 0
    %1470 = vmatpush2.bf16.msra.mxu0 0
    %1471 = vmatprep.subr.bf16.mxu0 0
    %1472 = vmatpush2.bf16.msra.mxu0 0
    %1473 = vmatprep.subr.bf16.mxu0 0
    %1474 = vmatpush2.bf16.msra.mxu0 0
    %1475 = vmatprep.subr.bf16.mxu0 0
    %1476 = vmatpush2.bf16.msra.mxu0 0
    %1477 = vmatprep.subr.bf16.mxu0 0
    %1478 = vmatpush2.bf16.msra.mxu0 0
    %1479 = vmatprep.subr.bf16.mxu0 0
    %1480 = vmatpush2.bf16.msra.mxu0 0
    %1481 = vmatprep.subr.bf16.mxu0 0
    %1482 = vmatpush2.bf16.msra.mxu0 0
    %1483 = vmatprep.mubr.bf16.mxu0 0
    %1484 = vmatmul.mubr.bf16.gmra.mxu0 %v1346
    %v1485 = vpop.f32.mrf.mxu0
    %v1486 = vadd.f32 0.0, %v1485
    %v1487 = vpop.f32.mrf.mxu0
    %v1488 = vpop.f32.mrf.mxu0
    %v1489 = vpop.f32.mrf.mxu0
    %1490 = vdwg.mxu0
    %v1491 = vpack.c.bf16 %v1486, %v1414
    %v1493 = vunpack.c.l.b16 %v1491
    %v1494 = vunpack.c.h.b16 %v1491
    %v1495 = vpack.c.b16 %v1493, %v1493
    %v1496 = vpack.c.b16 %v1494, %v1494
    %1497 = vrot.lane.b32.xlu0 %v1495, 8
    %v1498 = vpop.permute.xlu0 %1497
    %1499 = vrot.lane.b32.xlu0 %v1496, 8
    %v1500 = vpop.permute.xlu0 %1499
    %vm1503 = vcmask 126016
    %1504 = vst.msk [vmem:[#allocation2] sm:$0xf] %vm1503, %v1498
    %1505 = vst.msk [vmem:[#allocation2 + $0x4] sm:$0xf] %vm1503, %v1500
    %v1506 = vld [vmem:[#allocation5] sm:$0xff]
    %v1507 = vld [vmem:[#allocation5 + $0x8] sm:$0xff]
    %v1508 = vadd.f32 %v1506, %v1343
    %v1509 = vadd.f32 %v1507, %v1344
    %1510 = vst [vmem:[#allocation5] sm:$0xff] %v1508
    %1511 = vst [vmem:[#allocation5 + $0x8] sm:$0xff] %v1509
    %1512 = vrot.lane.b32.xlu0 %v887, 112
    %v1513 = vpop.permute.xlu0 %1512
    %1514 = vrot.lane.b32.xlu0 %v540, 112
    %v1515 = vpop.permute.xlu0 %1514
    %1516 = vrot.lane.b32.xlu0 %v541, 112
    %v1517 = vpop.permute.xlu0 %1516
    %1518 = vrot.lane.b32.xlu0 %v542, 112
    %v1519 = vpop.permute.xlu0 %1518
    %1520 = vrot.lane.b32.xlu0 %v543, 112
    %v1521 = vpop.permute.xlu0 %1520
    %1522 = vrot.lane.b32.xlu0 %v544, 112
    %v1523 = vpop.permute.xlu0 %1522
    %1524 = vrot.lane.b32.xlu0 %v545, 112
    %v1525 = vpop.permute.xlu0 %1524
    %1526 = vrot.lane.b32.xlu0 %v546, 112
    %v1527 = vpop.permute.xlu0 %1526
    %1528 = vrot.lane.b32.xlu0 %v547, 112
    %v1529 = vpop.permute.xlu0 %1528
    %v1531 = vsel %vm893, %v1513, 0
    %v1534 = vsel %vm893, %v1515, 0
    %v1537 = vsel %vm893, %v1517, 0
    %v1540 = vsel %vm893, %v1519, 0
    %v1543 = vsel %vm893, %v1521, 0
    %v1546 = vsel %vm893, %v1523, 0
    %v1549 = vsel %vm893, %v1525, 0
    %v1552 = vsel %vm893, %v1527, 0
    %v1555 = vsel %vm893, %v1529, 0
    %1557 = vmatprep.subr.bf16.mxu0 0
    %1558 = vmatpush1.bf16.xpose.msra.mxu0 %v1555
    %1559 = vmatprep.subr.bf16.mxu0 0
    %1560 = vmatpush1.bf16.xpose.msra.mxu0 %v1552
    %1561 = vmatprep.subr.bf16.mxu0 0
    %1562 = vmatpush1.bf16.xpose.msra.mxu0 %v1549
    %1563 = vmatprep.subr.bf16.mxu0 0
    %1564 = vmatpush1.bf16.xpose.msra.mxu0 %v1546
    %1565 = vmatprep.subr.bf16.mxu0 0
    %1566 = vmatpush1.bf16.xpose.msra.mxu0 %v1543
    %1567 = vmatprep.subr.bf16.mxu0 0
    %1568 = vmatpush1.bf16.xpose.msra.mxu0 %v1540
    %1569 = vmatprep.subr.bf16.mxu0 0
    %1570 = vmatpush1.bf16.xpose.msra.mxu0 %v1537
    %1571 = vmatprep.subr.bf16.mxu0 0
    %1572 = vmatpush1.bf16.xpose.msra.mxu0 %v1534
    %1573 = vmatprep.subr.bf16.mxu0 0
    %1574 = vmatpush2.bf16.xpose.msra.mxu0 0
    %1575 = vmatprep.subr.bf16.mxu0 0
    %1576 = vmatpush2.bf16.xpose.msra.mxu0 0
    %1577 = vmatprep.subr.bf16.mxu0 0
    %1578 = vmatpush2.bf16.xpose.msra.mxu0 0
    %1579 = vmatprep.subr.bf16.mxu0 0
    %1580 = vmatpush2.bf16.xpose.msra.mxu0 0
    %1581 = vmatprep.subr.bf16.mxu0 0
    %1582 = vmatpush2.bf16.xpose.msra.mxu0 0
    %1583 = vmatprep.subr.bf16.mxu0 0
    %1584 = vmatpush2.bf16.xpose.msra.mxu0 0
    %1585 = vmatprep.subr.bf16.mxu0 0
    %1586 = vmatpush2.bf16.xpose.msra.mxu0 0
    %1587 = vmatprep.subr.bf16.mxu0 0
    %1588 = vmatpush2.bf16.xpose.msra.mxu0 0
    %1589 = vmatprep.mubr.bf16.mxu0 0
    %1590 = vmatmul.mubr.bf16.gmra.mxu0 %v1531
    %v1591 = vpop.f32.mrf.mxu0
    %v1592 = vadd.f32 %v892, %v1591
    %v1593 = vpop.f32.mrf.mxu0
    %v1594 = vpop.f32.mrf.mxu0
    %v1595 = vpop.f32.mrf.mxu0
    %1596 = vdwg.mxu0
    %1597 = vrot.lane.b32.xlu0 %v888, 112
    %v1598 = vpop.permute.xlu0 %1597
    %1599 = vrot.lane.b32.xlu0 %v548, 112
    %v1600 = vpop.permute.xlu0 %1599
    %1601 = vrot.lane.b32.xlu0 %v549, 112
    %v1602 = vpop.permute.xlu0 %1601
    %1603 = vrot.lane.b32.xlu0 %v550, 112
    %v1604 = vpop.permute.xlu0 %1603
    %1605 = vrot.lane.b32.xlu0 %v551, 112
    %v1606 = vpop.permute.xlu0 %1605
    %1607 = vrot.lane.b32.xlu0 %v552, 112
    %v1608 = vpop.permute.xlu0 %1607
    %1609 = vrot.lane.b32.xlu0 %v553, 112
    %v1610 = vpop.permute.xlu0 %1609
    %1611 = vrot.lane.b32.xlu0 %v554, 112
    %v1612 = vpop.permute.xlu0 %1611
    %1613 = vrot.lane.b32.xlu0 %v555, 112
    %v1614 = vpop.permute.xlu0 %1613
    %v1616 = vsel %vm893, %v1598, 0
    %v1619 = vsel %vm893, %v1600, 0
    %v1622 = vsel %vm893, %v1602, 0
    %v1625 = vsel %vm893, %v1604, 0
    %v1628 = vsel %vm893, %v1606, 0
    %v1631 = vsel %vm893, %v1608, 0
    %v1634 = vsel %vm893, %v1610, 0
    %v1637 = vsel %vm893, %v1612, 0
    %v1640 = vsel %vm893, %v1614, 0
    %1642 = vmatprep.subr.bf16.mxu0 0
    %1643 = vmatpush1.bf16.xpose.msra.mxu0 %v1640
    %1644 = vmatprep.subr.bf16.mxu0 0
    %1645 = vmatpush1.bf16.xpose.msra.mxu0 %v1637
    %1646 = vmatprep.subr.bf16.mxu0 0
    %1647 = vmatpush1.bf16.xpose.msra.mxu0 %v1634
    %1648 = vmatprep.subr.bf16.mxu0 0
    %1649 = vmatpush1.bf16.xpose.msra.mxu0 %v1631
    %1650 = vmatprep.subr.bf16.mxu0 0
    %1651 = vmatpush1.bf16.xpose.msra.mxu0 %v1628
    %1652 = vmatprep.subr.bf16.mxu0 0
    %1653 = vmatpush1.bf16.xpose.msra.mxu0 %v1625
    %1654 = vmatprep.subr.bf16.mxu0 0
    %1655 = vmatpush1.bf16.xpose.msra.mxu0 %v1622
    %1656 = vmatprep.subr.bf16.mxu0 0
    %1657 = vmatpush1.bf16.xpose.msra.mxu0 %v1619
    %1658 = vmatprep.subr.bf16.mxu0 0
    %1659 = vmatpush2.bf16.xpose.msra.mxu0 0
    %1660 = vmatprep.subr.bf16.mxu0 0
    %1661 = vmatpush2.bf16.xpose.msra.mxu0 0
    %1662 = vmatprep.subr.bf16.mxu0 0
    %1663 = vmatpush2.bf16.xpose.msra.mxu0 0
    %1664 = vmatprep.subr.bf16.mxu0 0
    %1665 = vmatpush2.bf16.xpose.msra.mxu0 0
    %1666 = vmatprep.subr.bf16.mxu0 0
    %1667 = vmatpush2.bf16.xpose.msra.mxu0 0
    %1668 = vmatprep.subr.bf16.mxu0 0
    %1669 = vmatpush2.bf16.xpose.msra.mxu0 0
    %1670 = vmatprep.subr.bf16.mxu0 0
    %1671 = vmatpush2.bf16.xpose.msra.mxu0 0
    %1672 = vmatprep.subr.bf16.mxu0 0
    %1673 = vmatpush2.bf16.xpose.msra.mxu0 0
    %1674 = vmatprep.mubr.bf16.mxu0 0
    %1675 = vmatmul.mubr.bf16.gmra.mxu0 %v1616
    %v1676 = vpop.f32.mrf.mxu0
    %v1677 = vadd.f32 %v892, %v1676
    %v1678 = vpop.f32.mrf.mxu0
    %v1679 = vpop.f32.mrf.mxu0
    %v1680 = vpop.f32.mrf.mxu0
    %1681 = vdwg.mxu0
    %1682 = vmax.xlane.f32.xlu0 %v1592
    %v1683 = vpop.xlane.xlu0 %1682
    %1684 = vmax.xlane.f32.xlu0 %v1677
    %v1685 = vpop.xlane.xlu0 %1684
    %v1686 = vsub.f32 %v1592, %v1683
    %v1687 = vsub.f32 %v1677, %v1685
    %v1688 = vmul.f32 %v1686, 1.442695
    %v1689 = vpow.pop %v1688
    %v1690 = vmul.f32 %v1687, 1.442695
    %v1691 = vpow.pop %v1690
    %1692 = vadd.xlane.f32.xlu0 %v1689
    %v1693 = vpop.xlane.xlu0 %1692
    %1694 = vadd.xlane.f32.xlu0 %v1691
    %v1695 = vpop.xlane.xlu0 %1694
    %v1696 = vrcp.pop %v1693
    %v1697 = vrcp.pop %v1695
    %v1698 = vmul.f32 %v1689, %v1696
    %v1699 = vmul.f32 %v1691, %v1697
    %v1700 = vpack.c.bf16 %v1698, %v1698
    %v1701 = vpack.c.bf16 %v1699, %v1699
    %1702 = vrot.lane.b32.xlu0 %v868, 112
    %v1703 = vpop.permute.xlu0 %1702
    %1704 = vrot.lane.b32.xlu0 %v869, 112
    %v1705 = vpop.permute.xlu0 %1704
    %1706 = vrot.lane.b32.xlu0 %v870, 112
    %v1707 = vpop.permute.xlu0 %1706
    %1708 = vrot.lane.b32.xlu0 %v871, 112
    %v1709 = vpop.permute.xlu0 %1708
    %1710 = vrot.lane.b32.xlu0 %v872, 112
    %v1711 = vpop.permute.xlu0 %1710
    %1712 = vrot.lane.b32.xlu0 %v873, 112
    %v1713 = vpop.permute.xlu0 %1712
    %1714 = vrot.lane.b32.xlu0 %v874, 112
    %v1715 = vpop.permute.xlu0 %1714
    %1716 = vrot.lane.b32.xlu0 %v875, 112
    %v1717 = vpop.permute.xlu0 %1716
    %1726 = vmatprep.subr.bf16.mxu0 0
    %1727 = vmatpush1.bf16.msra.mxu0 %v1717
    %1728 = vmatprep.subr.bf16.mxu0 0
    %1729 = vmatpush1.bf16.msra.mxu0 %v1715
    %1730 = vmatprep.subr.bf16.mxu0 0
    %1731 = vmatpush1.bf16.msra.mxu0 %v1713
    %1732 = vmatprep.subr.bf16.mxu0 0
    %1733 = vmatpush1.bf16.msra.mxu0 %v1711
    %1734 = vmatprep.subr.bf16.mxu0 0
    %1735 = vmatpush1.bf16.msra.mxu0 %v1709
    %1736 = vmatprep.subr.bf16.mxu0 0
    %1737 = vmatpush1.bf16.msra.mxu0 %v1707
    %1738 = vmatprep.subr.bf16.mxu0 0
    %1739 = vmatpush1.bf16.msra.mxu0 %v1705
    %1740 = vmatprep.subr.bf16.mxu0 0
    %1741 = vmatpush1.bf16.msra.mxu0 %v1703
    %1742 = vmatprep.subr.bf16.mxu0 0
    %1743 = vmatpush2.bf16.msra.mxu0 0
    %1744 = vmatprep.subr.bf16.mxu0 0
    %1745 = vmatpush2.bf16.msra.mxu0 0
    %1746 = vmatprep.subr.bf16.mxu0 0
    %1747 = vmatpush2.bf16.msra.mxu0 0
    %1748 = vmatprep.subr.bf16.mxu0 0
    %1749 = vmatpush2.bf16.msra.mxu0 0
    %1750 = vmatprep.subr.bf16.mxu0 0
    %1751 = vmatpush2.bf16.msra.mxu0 0
    %1752 = vmatprep.subr.bf16.mxu0 0
    %1753 = vmatpush2.bf16.msra.mxu0 0
    %1754 = vmatprep.subr.bf16.mxu0 0
    %1755 = vmatpush2.bf16.msra.mxu0 0
    %1756 = vmatprep.subr.bf16.mxu0 0
    %1757 = vmatpush2.bf16.msra.mxu0 0
    %1758 = vmatprep.mubr.bf16.mxu0 0
    %1759 = vmatmul.mubr.bf16.gmra.mxu0 %v1700
    %v1760 = vpop.f32.mrf.mxu0
    %v1761 = vadd.f32 0.0, %v1760
    %v1762 = vpop.f32.mrf.mxu0
    %v1763 = vpop.f32.mrf.mxu0
    %v1764 = vpop.f32.mrf.mxu0
    %1765 = vdwg.mxu0
    %1766 = vrot.lane.b32.xlu0 %v876, 112
    %v1767 = vpop.permute.xlu0 %1766
    %1768 = vrot.lane.b32.xlu0 %v877, 112
    %v1769 = vpop.permute.xlu0 %1768
    %1770 = vrot.lane.b32.xlu0 %v878, 112
    %v1771 = vpop.permute.xlu0 %1770
    %1772 = vrot.lane.b32.xlu0 %v879, 112
    %v1773 = vpop.permute.xlu0 %1772
    %1774 = vrot.lane.b32.xlu0 %v880, 112
    %v1775 = vpop.permute.xlu0 %1774
    %1776 = vrot.lane.b32.xlu0 %v881, 112
    %v1777 = vpop.permute.xlu0 %1776
    %1778 = vrot.lane.b32.xlu0 %v882, 112
    %v1779 = vpop.permute.xlu0 %1778
    %1780 = vrot.lane.b32.xlu0 %v883, 112
    %v1781 = vpop.permute.xlu0 %1780
    %1790 = vmatprep.subr.bf16.mxu0 0
    %1791 = vmatpush1.bf16.msra.mxu0 %v1781
    %1792 = vmatprep.subr.bf16.mxu0 0
    %1793 = vmatpush1.bf16.msra.mxu0 %v1779
    %1794 = vmatprep.subr.bf16.mxu0 0
    %1795 = vmatpush1.bf16.msra.mxu0 %v1777
    %1796 = vmatprep.subr.bf16.mxu0 0
    %1797 = vmatpush1.bf16.msra.mxu0 %v1775
    %1798 = vmatprep.subr.bf16.mxu0 0
    %1799 = vmatpush1.bf16.msra.mxu0 %v1773
    %1800 = vmatprep.subr.bf16.mxu0 0
    %1801 = vmatpush1.bf16.msra.mxu0 %v1771
    %1802 = vmatprep.subr.bf16.mxu0 0
    %1803 = vmatpush1.bf16.msra.mxu0 %v1769
    %1804 = vmatprep.subr.bf16.mxu0 0
    %1805 = vmatpush1.bf16.msra.mxu0 %v1767
    %1806 = vmatprep.subr.bf16.mxu0 0
    %1807 = vmatpush2.bf16.msra.mxu0 0
    %1808 = vmatprep.subr.bf16.mxu0 0
    %1809 = vmatpush2.bf16.msra.mxu0 0
    %1810 = vmatprep.subr.bf16.mxu0 0
    %1811 = vmatpush2.bf16.msra.mxu0 0
    %1812 = vmatprep.subr.bf16.mxu0 0
    %1813 = vmatpush2.bf16.msra.mxu0 0
    %1814 = vmatprep.subr.bf16.mxu0 0
    %1815 = vmatpush2.bf16.msra.mxu0 0
    %1816 = vmatprep.subr.bf16.mxu0 0
    %1817 = vmatpush2.bf16.msra.mxu0 0
    %1818 = vmatprep.subr.bf16.mxu0 0
    %1819 = vmatpush2.bf16.msra.mxu0 0
    %1820 = vmatprep.subr.bf16.mxu0 0
    %1821 = vmatpush2.bf16.msra.mxu0 0
    %1822 = vmatprep.mubr.bf16.mxu0 0
    %1823 = vmatmul.mubr.bf16.gmra.mxu0 %v1701
    %v1824 = vpop.f32.mrf.mxu0
    %v1825 = vadd.f32 0.0, %v1824
    %v1826 = vpop.f32.mrf.mxu0
    %v1827 = vpop.f32.mrf.mxu0
    %v1828 = vpop.f32.mrf.mxu0
    %1829 = vdwg.mxu0
    %v1830 = vpack.c.bf16 %v1825, %v1761
    %v1832 = vunpack.c.l.b16 %v1830
    %v1833 = vunpack.c.h.b16 %v1830
    %v1834 = vpack.c.b16 %v1832, %v1832
    %v1835 = vpack.c.b16 %v1833, %v1833
    %1836 = vrot.lane.b32.xlu0 %v1834, 16
    %v1837 = vpop.permute.xlu0 %1836
    %1838 = vrot.lane.b32.xlu0 %v1835, 16
    %v1839 = vpop.permute.xlu0 %1838
    %vm1842 = vcmask 191616
    %1843 = vst.msk [vmem:[#allocation2] sm:$0xf] %vm1842, %v1837
    %1844 = vst.msk [vmem:[#allocation2 + $0x4] sm:$0xf] %vm1842, %v1839
    %v1845 = vld [vmem:[#allocation5] sm:$0xff]
    %v1846 = vld [vmem:[#allocation5 + $0x8] sm:$0xff]
    %v1847 = vadd.f32 %v1845, %v1698
    %v1848 = vadd.f32 %v1846, %v1699
    %1849 = vst [vmem:[#allocation5] sm:$0xff] %v1847
    %1850 = vst [vmem:[#allocation5 + $0x8] sm:$0xff] %v1848
    %1851 = vrot.lane.b32.xlu0 %v887, 104
    %v1852 = vpop.permute.xlu0 %1851
    %1853 = vrot.lane.b32.xlu0 %v540, 104
    %v1854 = vpop.permute.xlu0 %1853
    %1855 = vrot.lane.b32.xlu0 %v541, 104
    %v1856 = vpop.permute.xlu0 %1855
    %1857 = vrot.lane.b32.xlu0 %v542, 104
    %v1858 = vpop.permute.xlu0 %1857
    %1859 = vrot.lane.b32.xlu0 %v543, 104
    %v1860 = vpop.permute.xlu0 %1859
    %1861 = vrot.lane.b32.xlu0 %v544, 104
    %v1862 = vpop.permute.xlu0 %1861
    %1863 = vrot.lane.b32.xlu0 %v545, 104
    %v1864 = vpop.permute.xlu0 %1863
    %1865 = vrot.lane.b32.xlu0 %v546, 104
    %v1866 = vpop.permute.xlu0 %1865
    %1867 = vrot.lane.b32.xlu0 %v547, 104
    %v1868 = vpop.permute.xlu0 %1867
    %v1870 = vsel %vm893, %v1852, 0
    %v1873 = vsel %vm893, %v1854, 0
    %v1876 = vsel %vm893, %v1856, 0
    %v1879 = vsel %vm893, %v1858, 0
    %v1882 = vsel %vm893, %v1860, 0
    %v1885 = vsel %vm893, %v1862, 0
    %v1888 = vsel %vm893, %v1864, 0
    %v1891 = vsel %vm893, %v1866, 0
    %v1894 = vsel %vm893, %v1868, 0
    %1896 = vmatprep.subr.bf16.mxu0 0
    %1897 = vmatpush1.bf16.xpose.msra.mxu0 %v1894
    %1898 = vmatprep.subr.bf16.mxu0 0
    %1899 = vmatpush1.bf16.xpose.msra.mxu0 %v1891
    %1900 = vmatprep.subr.bf16.mxu0 0
    %1901 = vmatpush1.bf16.xpose.msra.mxu0 %v1888
    %1902 = vmatprep.subr.bf16.mxu0 0
    %1903 = vmatpush1.bf16.xpose.msra.mxu0 %v1885
    %1904 = vmatprep.subr.bf16.mxu0 0
    %1905 = vmatpush1.bf16.xpose.msra.mxu0 %v1882
    %1906 = vmatprep.subr.bf16.mxu0 0
    %1907 = vmatpush1.bf16.xpose.msra.mxu0 %v1879
    %1908 = vmatprep.subr.bf16.mxu0 0
    %1909 = vmatpush1.bf16.xpose.msra.mxu0 %v1876
    %1910 = vmatprep.subr.bf16.mxu0 0
    %1911 = vmatpush1.bf16.xpose.msra.mxu0 %v1873
    %1912 = vmatprep.subr.bf16.mxu0 0
    %1913 = vmatpush2.bf16.xpose.msra.mxu0 0
    %1914 = vmatprep.subr.bf16.mxu0 0
    %1915 = vmatpush2.bf16.xpose.msra.mxu0 0
    %1916 = vmatprep.subr.bf16.mxu0 0
    %1917 = vmatpush2.bf16.xpose.msra.mxu0 0
    %1918 = vmatprep.subr.bf16.mxu0 0
    %1919 = vmatpush2.bf16.xpose.msra.mxu0 0
    %1920 = vmatprep.subr.bf16.mxu0 0
    %1921 = vmatpush2.bf16.xpose.msra.mxu0 0
    %1922 = vmatprep.subr.bf16.mxu0 0
    %1923 = vmatpush2.bf16.xpose.msra.mxu0 0
    %1924 = vmatprep.subr.bf16.mxu0 0
    %1925 = vmatpush2.bf16.xpose.msra.mxu0 0
    %1926 = vmatprep.subr.bf16.mxu0 0
    %1927 = vmatpush2.bf16.xpose.msra.mxu0 0
    %1928 = vmatprep.mubr.bf16.mxu0 0
    %1929 = vmatmul.mubr.bf16.gmra.mxu0 %v1870
    %v1930 = vpop.f32.mrf.mxu0
    %v1931 = vadd.f32 %v892, %v1930
    %v1932 = vpop.f32.mrf.mxu0
    %v1933 = vpop.f32.mrf.mxu0
    %v1934 = vpop.f32.mrf.mxu0
    %1935 = vdwg.mxu0
    %1936 = vrot.lane.b32.xlu0 %v888, 104
    %v1937 = vpop.permute.xlu0 %1936
    %1938 = vrot.lane.b32.xlu0 %v548, 104
    %v1939 = vpop.permute.xlu0 %1938
    %1940 = vrot.lane.b32.xlu0 %v549, 104
    %v1941 = vpop.permute.xlu0 %1940
    %1942 = vrot.lane.b32.xlu0 %v550, 104
    %v1943 = vpop.permute.xlu0 %1942
    %1944 = vrot.lane.b32.xlu0 %v551, 104
    %v1945 = vpop.permute.xlu0 %1944
    %1946 = vrot.lane.b32.xlu0 %v552, 104
    %v1947 = vpop.permute.xlu0 %1946
    %1948 = vrot.lane.b32.xlu0 %v553, 104
    %v1949 = vpop.permute.xlu0 %1948
    %1950 = vrot.lane.b32.xlu0 %v554, 104
    %v1951 = vpop.permute.xlu0 %1950
    %1952 = vrot.lane.b32.xlu0 %v555, 104
    %v1953 = vpop.permute.xlu0 %1952
    %v1955 = vsel %vm893, %v1937, 0
    %v1958 = vsel %vm893, %v1939, 0
    %v1961 = vsel %vm893, %v1941, 0
    %v1964 = vsel %vm893, %v1943, 0
    %v1967 = vsel %vm893, %v1945, 0
    %v1970 = vsel %vm893, %v1947, 0
    %v1973 = vsel %vm893, %v1949, 0
    %v1976 = vsel %vm893, %v1951, 0
    %v1979 = vsel %vm893, %v1953, 0
    %1981 = vmatprep.subr.bf16.mxu0 0
    %1982 = vmatpush1.bf16.xpose.msra.mxu0 %v1979
    %1983 = vmatprep.subr.bf16.mxu0 0
    %1984 = vmatpush1.bf16.xpose.msra.mxu0 %v1976
    %1985 = vmatprep.subr.bf16.mxu0 0
    %1986 = vmatpush1.bf16.xpose.msra.mxu0 %v1973
    %1987 = vmatprep.subr.bf16.mxu0 0
    %1988 = vmatpush1.bf16.xpose.msra.mxu0 %v1970
    %1989 = vmatprep.subr.bf16.mxu0 0
    %1990 = vmatpush1.bf16.xpose.msra.mxu0 %v1967
    %1991 = vmatprep.subr.bf16.mxu0 0
    %1992 = vmatpush1.bf16.xpose.msra.mxu0 %v1964
    %1993 = vmatprep.subr.bf16.mxu0 0
    %1994 = vmatpush1.bf16.xpose.msra.mxu0 %v1961
    %1995 = vmatprep.subr.bf16.mxu0 0
    %1996 = vmatpush1.bf16.xpose.msra.mxu0 %v1958
    %1997 = vmatprep.subr.bf16.mxu0 0
    %1998 = vmatpush2.bf16.xpose.msra.mxu0 0
    %1999 = vmatprep.subr.bf16.mxu0 0
    %2000 = vmatpush2.bf16.xpose.msra.mxu0 0
    %2001 = vmatprep.subr.bf16.mxu0 0
    %2002 = vmatpush2.bf16.xpose.msra.mxu0 0
    %2003 = vmatprep.subr.bf16.mxu0 0
    %2004 = vmatpush2.bf16.xpose.msra.mxu0 0
    %2005 = vmatprep.subr.bf16.mxu0 0
    %2006 = vmatpush2.bf16.xpose.msra.mxu0 0
    %2007 = vmatprep.subr.bf16.mxu0 0
    %2008 = vmatpush2.bf16.xpose.msra.mxu0 0
    %2009 = vmatprep.subr.bf16.mxu0 0
    %2010 = vmatpush2.bf16.xpose.msra.mxu0 0
    %2011 = vmatprep.subr.bf16.mxu0 0
    %2012 = vmatpush2.bf16.xpose.msra.mxu0 0
    %2013 = vmatprep.mubr.bf16.mxu0 0
    %2014 = vmatmul.mubr.bf16.gmra.mxu0 %v1955
    %v2015 = vpop.f32.mrf.mxu0
    %v2016 = vadd.f32 %v892, %v2015
    %v2017 = vpop.f32.mrf.mxu0
    %v2018 = vpop.f32.mrf.mxu0
    %v2019 = vpop.f32.mrf.mxu0
    %2020 = vdwg.mxu0
    %2021 = vmax.xlane.f32.xlu0 %v1931
    %v2022 = vpop.xlane.xlu0 %2021
    %2023 = vmax.xlane.f32.xlu0 %v2016
    %v2024 = vpop.xlane.xlu0 %2023
    %v2025 = vsub.f32 %v1931, %v2022
    %v2026 = vsub.f32 %v2016, %v2024
    %v2027 = vmul.f32 %v2025, 1.442695
    %v2028 = vpow.pop %v2027
    %v2029 = vmul.f32 %v2026, 1.442695
    %v2030 = vpow.pop %v2029
    %2031 = vadd.xlane.f32.xlu0 %v2028
    %v2032 = vpop.xlane.xlu0 %2031
    %2033 = vadd.xlane.f32.xlu0 %v2030
    %v2034 = vpop.xlane.xlu0 %2033
    %v2035 = vrcp.pop %v2032
    %v2036 = vrcp.pop %v2034
    %v2037 = vmul.f32 %v2028, %v2035
    %v2038 = vmul.f32 %v2030, %v2036
    %v2039 = vpack.c.bf16 %v2037, %v2037
    %v2040 = vpack.c.bf16 %v2038, %v2038
    %2041 = vrot.lane.b32.xlu0 %v868, 104
    %v2042 = vpop.permute.xlu0 %2041
    %2043 = vrot.lane.b32.xlu0 %v869, 104
    %v2044 = vpop.permute.xlu0 %2043
    %2045 = vrot.lane.b32.xlu0 %v870, 104
    %v2046 = vpop.permute.xlu0 %2045
    %2047 = vrot.lane.b32.xlu0 %v871, 104
    %v2048 = vpop.permute.xlu0 %2047
    %2049 = vrot.lane.b32.xlu0 %v872, 104
    %v2050 = vpop.permute.xlu0 %2049
    %2051 = vrot.lane.b32.xlu0 %v873, 104
    %v2052 = vpop.permute.xlu0 %2051
    %2053 = vrot.lane.b32.xlu0 %v874, 104
    %v2054 = vpop.permute.xlu0 %2053
    %2055 = vrot.lane.b32.xlu0 %v875, 104
    %v2056 = vpop.permute.xlu0 %2055
    %2065 = vmatprep.subr.bf16.mxu0 0
    %2066 = vmatpush1.bf16.msra.mxu0 %v2056
    %2067 = vmatprep.subr.bf16.mxu0 0
    %2068 = vmatpush1.bf16.msra.mxu0 %v2054
    %2069 = vmatprep.subr.bf16.mxu0 0
    %2070 = vmatpush1.bf16.msra.mxu0 %v2052
    %2071 = vmatprep.subr.bf16.mxu0 0
    %2072 = vmatpush1.bf16.msra.mxu0 %v2050
    %2073 = vmatprep.subr.bf16.mxu0 0
    %2074 = vmatpush1.bf16.msra.mxu0 %v2048
    %2075 = vmatprep.subr.bf16.mxu0 0
    %2076 = vmatpush1.bf16.msra.mxu0 %v2046
    %2077 = vmatprep.subr.bf16.mxu0 0
    %2078 = vmatpush1.bf16.msra.mxu0 %v2044
    %2079 = vmatprep.subr.bf16.mxu0 0
    %2080 = vmatpush1.bf16.msra.mxu0 %v2042
    %2081 = vmatprep.subr.bf16.mxu0 0
    %2082 = vmatpush2.bf16.msra.mxu0 0
    %2083 = vmatprep.subr.bf16.mxu0 0
    %2084 = vmatpush2.bf16.msra.mxu0 0
    %2085 = vmatprep.subr.bf16.mxu0 0
    %2086 = vmatpush2.bf16.msra.mxu0 0
    %2087 = vmatprep.subr.bf16.mxu0 0
    %2088 = vmatpush2.bf16.msra.mxu0 0
    %2089 = vmatprep.subr.bf16.mxu0 0
    %2090 = vmatpush2.bf16.msra.mxu0 0
    %2091 = vmatprep.subr.bf16.mxu0 0
    %2092 = vmatpush2.bf16.msra.mxu0 0
    %2093 = vmatprep.subr.bf16.mxu0 0
    %2094 = vmatpush2.bf16.msra.mxu0 0
    %2095 = vmatprep.subr.bf16.mxu0 0
    %2096 = vmatpush2.bf16.msra.mxu0 0
    %2097 = vmatprep.mubr.bf16.mxu0 0
    %2098 = vmatmul.mubr.bf16.gmra.mxu0 %v2039
    %v2099 = vpop.f32.mrf.mxu0
    %v2100 = vadd.f32 0.0, %v2099
    %v2101 = vpop.f32.mrf.mxu0
    %v2102 = vpop.f32.mrf.mxu0
    %v2103 = vpop.f32.mrf.mxu0
    %2104 = vdwg.mxu0
    %2105 = vrot.lane.b32.xlu0 %v876, 104
    %v2106 = vpop.permute.xlu0 %2105
    %2107 = vrot.lane.b32.xlu0 %v877, 104
    %v2108 = vpop.permute.xlu0 %2107
    %2109 = vrot.lane.b32.xlu0 %v878, 104
    %v2110 = vpop.permute.xlu0 %2109
    %2111 = vrot.lane.b32.xlu0 %v879, 104
    %v2112 = vpop.permute.xlu0 %2111
    %2113 = vrot.lane.b32.xlu0 %v880, 104
    %v2114 = vpop.permute.xlu0 %2113
    %2115 = vrot.lane.b32.xlu0 %v881, 104
    %v2116 = vpop.permute.xlu0 %2115
    %2117 = vrot.lane.b32.xlu0 %v882, 104
    %v2118 = vpop.permute.xlu0 %2117
    %2119 = vrot.lane.b32.xlu0 %v883, 104
    %v2120 = vpop.permute.xlu0 %2119
    %2129 = vmatprep.subr.bf16.mxu0 0
    %2130 = vmatpush1.bf16.msra.mxu0 %v2120
    %2131 = vmatprep.subr.bf16.mxu0 0
    %2132 = vmatpush1.bf16.msra.mxu0 %v2118
    %2133 = vmatprep.subr.bf16.mxu0 0
    %2134 = vmatpush1.bf16.msra.mxu0 %v2116
    %2135 = vmatprep.subr.bf16.mxu0 0
    %2136 = vmatpush1.bf16.msra.mxu0 %v2114
    %2137 = vmatprep.subr.bf16.mxu0 0
    %2138 = vmatpush1.bf16.msra.mxu0 %v2112
    %2139 = vmatprep.subr.bf16.mxu0 0
    %2140 = vmatpush1.bf16.msra.mxu0 %v2110
    %2141 = vmatprep.subr.bf16.mxu0 0
    %2142 = vmatpush1.bf16.msra.mxu0 %v2108
    %2143 = vmatprep.subr.bf16.mxu0 0
    %2144 = vmatpush1.bf16.msra.mxu0 %v2106
    %2145 = vmatprep.subr.bf16.mxu0 0
    %2146 = vmatpush2.bf16.msra.mxu0 0
    %2147 = vmatprep.subr.bf16.mxu0 0
    %2148 = vmatpush2.bf16.msra.mxu0 0
    %2149 = vmatprep.subr.bf16.mxu0 0
    %2150 = vmatpush2.bf16.msra.mxu0 0
    %2151 = vmatprep.subr.bf16.mxu0 0
    %2152 = vmatpush2.bf16.msra.mxu0 0
    %2153 = vmatprep.subr.bf16.mxu0 0
    %2154 = vmatpush2.bf16.msra.mxu0 0
    %2155 = vmatprep.subr.bf16.mxu0 0
    %2156 = vmatpush2.bf16.msra.mxu0 0
    %2157 = vmatprep.subr.bf16.mxu0 0
    %2158 = vmatpush2.bf16.msra.mxu0 0
    %2159 = vmatprep.subr.bf16.mxu0 0
    %2160 = vmatpush2.bf16.msra.mxu0 0
    %2161 = vmatprep.mubr.bf16.mxu0 0
    %2162 = vmatmul.mubr.bf16.gmra.mxu0 %v2040
    %v2163 = vpop.f32.mrf.mxu0
    %v2164 = vadd.f32 0.0, %v2163
    %v2165 = vpop.f32.mrf.mxu0
    %v2166 = vpop.f32.mrf.mxu0
    %v2167 = vpop.f32.mrf.mxu0
    %2168 = vdwg.mxu0
    %v2169 = vpack.c.bf16 %v2164, %v2100
    %v2171 = vunpack.c.l.b16 %v2169
    %v2172 = vunpack.c.h.b16 %v2169
    %v2173 = vpack.c.b16 %v2171, %v2171
    %v2174 = vpack.c.b16 %v2172, %v2172
    %2175 = vrot.lane.b32.xlu0 %v2173, 24
    %v2176 = vpop.permute.xlu0 %2175
    %2177 = vrot.lane.b32.xlu0 %v2174, 24
    %v2178 = vpop.permute.xlu0 %2177
    %vm2181 = vcmask 257216
    %2182 = vst.msk [vmem:[#allocation2] sm:$0xf] %vm2181, %v2176
    %2183 = vst.msk [vmem:[#allocation2 + $0x4] sm:$0xf] %vm2181, %v2178
    %v2184 = vld [vmem:[#allocation5] sm:$0xff]
    %v2185 = vld [vmem:[#allocation5 + $0x8] sm:$0xff]
    %v2186 = vadd.f32 %v2184, %v2037
    %v2187 = vadd.f32 %v2185, %v2038
    %2188 = vst [vmem:[#allocation5] sm:$0xff] %v2186
    %2189 = vst [vmem:[#allocation5 + $0x8] sm:$0xff] %v2187
    %v2190 = vld [vmem:[#allocation5] sm:$0xff]
    %v2191 = vld [vmem:[#allocation5 + $0x8] sm:$0xff]
    %v2192 = vmul.f32 %v2190, 0.25
    %v2193 = vmul.f32 %v2191, 0.25
    %2194 = vst [vmem:[#allocation5] sm:$0xff] %v2192
    %2195 = vst [vmem:[#allocation5 + $0x8] sm:$0xff] %v2193
    %v2196 = vld [vmem:[#allocation2] sm:$0xf]
    %v2197 = vld [vmem:[#allocation2 + $0x4] sm:$0xf]
    %v2198 = vld [vmem:[%s10] sm:$0xf]
    %v2199 = vld [vmem:[%s10 + $0x4] sm:$0xf]
    %v2200 = vld [vmem:[%s10 + $0x8] sm:$0xf]
    %v2201 = vld [vmem:[%s10 + $0xc] sm:$0xf]
    %v2202 = vld [vmem:[%s11] sm:$0x1]
    %v2204 = vlaneseq
    %v2205 = vshrl.u32 %v2204, 7
    %v2206 = vsub.s32 0, %v2205
    %v2207 = vrot.slane %v2202, %v2206
    %v2211 = vunpack.c.l.b16 %v2196
    %v2212 = vunpack.c.l.b16 %v2197
    %v2213 = vpack.c.b16 %v2212, %v2211
    %v2218 = vunpack.c.l.b16 %v2198
    %v2219 = vunpack.c.l.b16 %v2199
    %v2220 = vunpack.c.l.b16 %v2200
    %v2221 = vunpack.c.l.b16 %v2201
    %v2222 = vpack.c.b16 %v2219, %v2218
    %v2223 = vpack.c.b16 %v2221, %v2220
    %v2227 = vsel %vm262, %v2213, 0
    %2229 = vmatprep.subr.bf16.mxu0 0
    %2230 = vmatpush1.bf16.msra.mxu0 0
    %2231 = vmatprep.subr.bf16.mxu0 0
    %2232 = vmatpush1.bf16.msra.mxu0 0
    %2233 = vmatprep.subr.bf16.mxu0 0
    %2234 = vmatpush1.bf16.msra.mxu0 0
    %2235 = vmatprep.subr.bf16.mxu0 0
    %2236 = vmatpush1.bf16.msra.mxu0 0
    %2237 = vmatprep.subr.bf16.mxu0 0
    %2238 = vmatpush1.bf16.msra.mxu0 0
    %2239 = vmatprep.subr.bf16.mxu0 0
    %2240 = vmatpush1.bf16.msra.mxu0 0
    %2241 = vmatprep.subr.bf16.mxu0 0
    %2242 = vmatpush1.bf16.msra.mxu0 %v2223
    %2243 = vmatprep.subr.bf16.mxu0 0
    %2244 = vmatpush1.bf16.msra.mxu0 %v2222
    %2245 = vmatprep.subr.bf16.mxu0 0
    %2246 = vmatpush2.bf16.msra.mxu0 0
    %2247 = vmatprep.subr.bf16.mxu0 0
    %2248 = vmatpush2.bf16.msra.mxu0 0
    %2249 = vmatprep.subr.bf16.mxu0 0
    %2250 = vmatpush2.bf16.msra.mxu0 0
    %2251 = vmatprep.subr.bf16.mxu0 0
    %2252 = vmatpush2.bf16.msra.mxu0 0
    %2253 = vmatprep.subr.bf16.mxu0 0
    %2254 = vmatpush2.bf16.msra.mxu0 0
    %2255 = vmatprep.subr.bf16.mxu0 0
    %2256 = vmatpush2.bf16.msra.mxu0 0
    %2257 = vmatprep.subr.bf16.mxu0 0
    %2258 = vmatpush2.bf16.msra.mxu0 0
    %2259 = vmatprep.subr.bf16.mxu0 0
    %2260 = vmatpush2.bf16.msra.mxu0 0
    %2261 = vmatprep.mubr.bf16.mxu0 0
    %2262 = vmatmul.mubr.bf16.gmra.mxu0 %v2227
    %v2263 = vpop.f32.mrf.mxu0
    %v2264 = vadd.f32 %v2207, %v2263
    %v2265 = vpop.f32.mrf.mxu0
    %v2266 = vpop.f32.mrf.mxu0
    %v2267 = vadd.f32 %v2207, %v2266
    %v2268 = vpop.f32.mrf.mxu0
    %2269 = vdwg.mxu0
    %v2270 = vadd.f32 %v54, %v2264
    %v2271 = vadd.f32 %v55, %v2267
    %v2272 = vsel %vm262, %v2270, 0.0
    %2273 = vadd.xlane.f32.xlu0 %v2272
    %v2274 = vpop.xlane.xlu0 %2273
    %v2275 = vsel %vm262, %v2271, 0.0
    %2276 = vadd.xlane.f32.xlu0 %v2275
    %v2277 = vpop.xlane.xlu0 %2276
    %v2278 = vrcp.pop 32.0
    %v2279 = vmul.f32 %v2274, %v2278
    %v2280 = vmul.f32 %v2277, %v2278
    %v2281 = vsub.f32 %v2270, %v2279
    %v2282 = vsub.f32 %v2271, %v2280
    %v2283 = vmul.f32 %v2281, %v2281
    %v2284 = vmul.f32 %v2282, %v2282
    %v2285 = vsel %vm262, %v2283, 0.0
    %2286 = vadd.xlane.f32.xlu0 %v2285
    %v2287 = vpop.xlane.xlu0 %2286
    %v2288 = vsel %vm262, %v2284, 0.0
    %2289 = vadd.xlane.f32.xlu0 %v2288
    %v2290 = vpop.xlane.xlu0 %2289
    %v2291 = vmul.f32 %v2287, %v2278
    %v2292 = vmul.f32 %v2290, %v2278
    %v2293 = vadd.f32 %v2291, 1e-05
    %v2294 = vadd.f32 %v2292, 1e-05
    %v2295 = vrsqrt.pop %v2293
    %v2296 = vrsqrt.pop %v2294
    %v2297 = vmul.f32 %v2281, %v2295
    %v2298 = vmul.f32 %v2282, %v2296
    %v2299 = vld [vmem:[%s12] sm:$0x1]
    %v2301 = vlaneseq
    %v2302 = vshrl.u32 %v2301, 7
    %v2303 = vsub.s32 0, %v2302
    %v2304 = vrot.slane %v2299, %v2303
    %v2306 = vmul.f32 %v2297, %v2304
    %v2307 = vmul.f32 %v2298, %v2304
    %v2308 = vld [vmem:[%s13] sm:$0x1]
    %v2310 = vlaneseq
    %v2311 = vshrl.u32 %v2310, 7
    %v2312 = vsub.s32 0, %v2311
    %v2313 = vrot.slane %v2308, %v2312
    %v2315 = vadd.f32 %v2306, %v2313
    %v2316 = vadd.f32 %v2307, %v2313
    %2317 = vst.msk [vmem:[#allocation3] sm:$0xff] %vm262, %v2315
    %2318 = vst.msk [vmem:[#allocation3 + $0x8] sm:$0xff] %vm262, %v2316
    // Predicated region
    $region58: #{tpu_custom_call.1} parent=1 // pred_check
      _
    $region59: #{tpu_custom_call.1} parent=1 // pred_check_branch
      %2320 = sbr.rel (0) target = $region61
    $region60: #{tpu_custom_call.1} parent=1 // pred_region
      %s2322 = ssub.s32 256, 256
      %2323 = vsyncadd [#allocation4], %s2322
      %s2324 = sshll.u32 [#allocation3], 4
      %s2325 = int_to_ptr.vmem [resolvable:$true] %s2324
      %2330 = dma.vmem_to_hbm [thread:$0]  %s2325, 256, %s14, [#allocation4], 128, 128, 8
    $region61: #{tpu_custom_call.1} parent=1 // pred_fallthru
      _
    // Predicated region
    $region62: #{tpu_custom_call.1} parent=1 // pred_check
      _
    $region63: #{tpu_custom_call.1} parent=1 // pred_check_branch
      %2332 = sbr.rel (0) target = $region65
    $region64: #{tpu_custom_call.1} parent=1 // pred_region
      %s2334 = ssub.s32 256, 256
      %2335 = vsyncadd [#allocation6], %s2334
      %s2336 = sshll.u32 [#allocation5], 4
      %s2337 = int_to_ptr.vmem [resolvable:$true] %s2336
      %2342 = dma.vmem_to_hbm [thread:$0]  %s2337, 256, %s15, [#allocation6], 128, 128, 8
    $region65: #{tpu_custom_call.1} parent=1 // pred_fallthru
      _
    // Predicated region
    $region66: #{tpu_custom_call.1} parent=1 // pred_check
      _
    $region67: #{tpu_custom_call.1} parent=1 // pred_check_branch
      %2344 = sbr.rel (0) target = $region69
    $region68: #{tpu_custom_call.1} parent=1 // pred_region
      %2345 = dma.done [#allocation4], 256
    $region69: #{tpu_custom_call.1} parent=1 // pred_fallthru
      _
    // Predicated region
    $region70: #{tpu_custom_call.1} parent=1 // pred_check
      _
    $region71: #{tpu_custom_call.1} parent=1 // pred_check_branch
      %2347 = sbr.rel (0) target = $region73
    $region72: #{tpu_custom_call.1} parent=1 // pred_region
      %2348 = dma.done [#allocation6], 256
    $region73: #{tpu_custom_call.1} parent=1 // pred_fallthru
      _
    %2349 = vsyncpa [#allocation4], 1
    %2350 = vsyncpa [#allocation6], 1

</llo_original>
